<compile_context>
chip_gen: v7x
topology: tpu7x:2x2x1
jax: 0.10.0
libtpu: 0.0.40
codegen_flags: <defaults>
</compile_context>

<pallas_src>
import functools

import jax
import jax.numpy as jnp
from jax.experimental import pallas as pl
from jax.experimental.pallas import tpu as pltpu


# ----------------------------------------------------------------------------
# helpers
# ----------------------------------------------------------------------------
def _round_up(x, m):
    return ((x + m - 1) // m) * m


def _pad2d(a, shape, dtype):
    """Cast to `dtype` and zero-pad a 2-D array up to `shape` (no-op if equal)."""
    a = a.astype(dtype)
    if a.shape == shape:
        return a
    out = jnp.zeros(shape, dtype)
    return out.at[: a.shape[0], : a.shape[1]].set(a)


# ----------------------------------------------------------------------------
# Pallas kernel 1: tiled matmul + bias (+ tanh) with f32 accumulator
# ----------------------------------------------------------------------------
def _matmul_bias_kernel(x_ref, w_ref, b_ref, o_ref, acc_ref, *, activation):
    @pl.when(pl.program_id(2) == 0)
    def _():
        acc_ref[...] = jnp.zeros_like(acc_ref)

    acc_ref[...] += jnp.dot(x_ref[...], w_ref[...],
                            preferred_element_type=jnp.float32)

    @pl.when(pl.program_id(2) == pl.num_programs(2) - 1)
    def _():
        out = acc_ref[...] + b_ref[...]            # (tm,tn) + (1,tn) broadcast
        if activation == "tanh":
            out = jnp.tanh(out)
        o_ref[...] = out.astype(o_ref.dtype)


def matmul_bias(x, w, b, activation="none", out_dtype=jnp.float32):
    """(M,K) @ (K,N) + b[N]  [+ tanh], tiled & pipelined on the MXU.

    Inputs are cast to bf16 (v6e/v7x MXU sweet spot), K and N are zero-padded
    to multiples of 128 so loads/stores are aligned and lane-dense; the f32
    accumulator lives in VMEM scratch across the K ("arbitrary") grid axis.
    """
    M, K = x.shape
    K2, N = w.shape
    assert K == K2 and b.shape == (N,)

    # Tile plan safe for v7x's 64 MiB physical / 32 MiB scoped VMEM:
    #   double-buffered bf16 input tiles + resident f32 acc + out tiles
    #   (tm*tk + tk*tn)*2B*2 + tm*tn*4B*3  <  4 MiB  at tm=tn=256, tk=512.
    # tm/tn are 128-multiples (256 when possible) to keep the 4x128^2 (v5e)
    # and 2x256^2 (v6e/v7x) MXUs fully fed.
    tm = _round_up(M, 8) if M <= 256 else 256
    Np = _round_up(N, 128)
    tn = Np if Np <= 256 else 256
    Np = _round_up(N, tn)
    Kp = _round_up(K, 128)
    tk = Kp if Kp <= 512 else 512
    Kp = _round_up(K, tk)
    Mp = _round_up(M, tm)

    xb = _pad2d(x, (Mp, Kp), jnp.bfloat16)
    wb = _pad2d(w, (Kp, Np), jnp.bfloat16)
    bb = _pad2d(b.reshape(1, N), (1, Np), jnp.float32)

    grid = (Mp // tm, Np // tn, Kp // tk)
    out = pl.pallas_call(
        functools.partial(_matmul_bias_kernel, activation=activation),
        out_shape=jax.ShapeDtypeStruct((Mp, Np), out_dtype),
        grid=grid,
        in_specs=[
            pl.BlockSpec((tm, tk), lambda i, j, k: (i, k)),
            pl.BlockSpec((tk, tn), lambda i, j, k: (k, j)),
            pl.BlockSpec((1, tn), lambda i, j, k: (0, j)),
        ],
        out_specs=pl.BlockSpec((tm, tn), lambda i, j, k: (i, j)),
        scratch_shapes=[pltpu.VMEM((tm, tn), jnp.float32)],
        compiler_params=pltpu.CompilerParams(
            dimension_semantics=("parallel", "parallel", "arbitrary")),
        cost_estimate=pl.CostEstimate(
            flops=2 * Mp * Np * Kp,
            transcendentals=Mp * Np if activation == "tanh" else 0,
            bytes_accessed=int(xb.size * 2 + wb.size * 2 + bb.size * 4
                               + Mp * Np * jnp.dtype(out_dtype).itemsize)),
    )(xb, wb, bb)
    if (Mp, Np) != (M, N):
        out = out[:M, :N]
    return out


# ----------------------------------------------------------------------------
# Pallas kernels 2+3: BatchNorm (training-mode batch stats) + ReLU in (M, C)
# ----------------------------------------------------------------------------
def _bn_stats_kernel(x_ref, sum_ref, sq_ref):
    @pl.when(pl.program_id(0) == 0)
    def _():
        sum_ref[...] = jnp.zeros_like(sum_ref)
        sq_ref[...] = jnp.zeros_like(sq_ref)

    x = x_ref[...].astype(jnp.float32)          # f32 accumulation of stats
    sum_ref[...] += jnp.sum(x, axis=0, keepdims=True)
    sq_ref[...] += jnp.sum(x * x, axis=0, keepdims=True)


def _bn_apply_relu_kernel(x_ref, scale_ref, shift_ref, o_ref):
    y = x_ref[...].astype(jnp.float32) * scale_ref[...] + shift_ref[...]
    o_ref[...] = jnp.maximum(y, 0.0).astype(o_ref.dtype)


def batchnorm_relu_nhwc(x, gamma, beta, eps=1e-5, out_dtype=jnp.bfloat16):
    """BatchNorm2d (biased / train-mode batch variance) + ReLU on NHWC input.

    Runs in the matmul-native (M = N*H*W, C) layout: channels on lanes (padded
    to 128), M tiled over an 'arbitrary' grid axis for the stats accumulation
    and a 'parallel' axis for the affine+ReLU pass.  No NCHW transposes.
    """
    N, H, W, C = x.shape
    M = N * H * W
    Cp = _round_up(C, 128)
    tm = _round_up(M, 8) if M <= 512 else 512
    Mp = _round_up(M, tm)

    # zero padding (rows and channels) contributes 0 to the sums; we divide by
    # the true M, so stats are exact.
    xs = _pad2d(x.reshape(M, C), (Mp, Cp), x.dtype)

    grid = (Mp // tm,)
    s, sq = pl.pallas_call(
        _bn_stats_kernel,
        out_shape=(jax.ShapeDtypeStruct((1, Cp), jnp.float32),
                   jax.ShapeDtypeStruct((1, Cp), jnp.float32)),
        grid=grid,
        in_specs=[pl.BlockSpec((tm, Cp), lambda i: (i, 0))],
        out_specs=(pl.BlockSpec((1, Cp), lambda i: (0, 0)),
                   pl.BlockSpec((1, Cp), lambda i: (0, 0))),
        compiler_params=pltpu.CompilerParams(
            dimension_semantics=("arbitrary",)),
    )(xs)

    mean = s / M
    var = jnp.maximum(sq / M - mean * mean, 0.0)      # biased (PyTorch train mode)
    g = _pad2d(gamma.reshape(1, C), (1, Cp), jnp.float32)
    bt = _pad2d(beta.reshape(1, C), (1, Cp), jnp.float32)
    scale = g * jax.lax.rsqrt(var + eps)
    shift = bt - mean * scale

    y = pl.pallas_call(
        _bn_apply_relu_kernel,
        out_shape=jax.ShapeDtypeStruct((Mp, Cp), out_dtype),
        grid=grid,
        in_specs=[pl.BlockSpec((tm, Cp), lambda i: (i, 0)),
                  pl.BlockSpec((1, Cp), lambda i: (0, 0)),
                  pl.BlockSpec((1, Cp), lambda i: (0, 0))],
        out_specs=pl.BlockSpec((tm, Cp), lambda i: (i, 0)),
        compiler_params=pltpu.CompilerParams(
            dimension_semantics=("parallel",)),
    )(xs, scale, shift)
    return y[:M, :C].reshape(N, H, W, C)


# ----------------------------------------------------------------------------
# Layer wrappers (NHWC glue around the Pallas matmul kernel)
# ----------------------------------------------------------------------------
def initial_convt_nhwc(z, w, b):
    """ConvTranspose2d(nz, cngf, 4, stride=1, pad=0) on a 1x1 input == matmul."""
    N, nz = z.shape[0], z.shape[1]
    cngf = w.shape[1]
    x2 = z.reshape(N, nz)
    # NHWC output columns ordered (kh, kw, co)
    w2 = jnp.transpose(w, (0, 2, 3, 1)).reshape(nz, 16 * cngf)
    bcol = jnp.tile(b, 16)                         # column (kh*4+kw)*cngf+co -> b[co]
    out = matmul_bias(x2, w2, bcol)                # (N, 16*cngf)
    return out.reshape(N, 4, 4, cngf)


def conv_transpose_s2_nhwc(x, w, b, activation="none", out_dtype=jnp.float32):
    """ConvTranspose2d(Cin, Cout, 4, stride=2, pad=1), NHWC in/out.

    Decomposed into 4 sub-pixel 2x2 forward convolutions (one per output-pixel
    phase): no zero-upsampling, 4x fewer FLOPs and a 4x smaller im2col slab
    (built in bf16) than the naive transposed-conv-as-conv formulation.
    """
    N, H, W, Cin = x.shape
    Cin2, Cout, k, _ = w.shape
    assert k == 4 and Cin2 == Cin
    OH, OW = 2 * H, 2 * W

    xb = x.astype(jnp.bfloat16)
    xp = jnp.pad(xb, ((0, 0), (1, 1), (1, 1), (0, 0)))   # 1-pixel halo

    # Per output-pixel phase, the 2-wide padded window uses these kernel taps
    # (index = offset dh/dw within the window):
    #   even output index (phase 0): taps (3, 1)   odd output index (phase 1): taps (2, 0)
    taps = {0: (3, 1), 1: (2, 0)}

    # TODO(synk): patch extraction is still XLA glue feeding the kernel in bf16;
    # folding the 2x2 window gather into the matmul kernel (shifted input
    # BlockSpecs accumulating 4 small dots) would remove this HBM round-trip.
    phase_outs = []
    for ph in (0, 1):
        row = []
        for pw in (0, 1):
            pats = [xp[:, ph + dh: ph + dh + H, pw + dw: pw + dw + W, :]
                    for dh in (0, 1) for dw in (0, 1)]
            pmat = jnp.concatenate(pats, axis=-1).reshape(N * H * W, 4 * Cin)
            wp = jnp.stack(
                [jnp.stack([w[:, :, taps[ph][dh], taps[pw][dw]]
                            for dw in (0, 1)], axis=0)
                 for dh in (0, 1)], axis=0)              # (2, 2, Cin, Cout)
            w_flat = wp.reshape(4 * Cin, Cout)
            y = matmul_bias(pmat, w_flat, b, activation=activation,
                            out_dtype=out_dtype)
            row.append(y.reshape(N, H, W, Cout))
        phase_outs.append(row)

    # interleave: out[n, 2h+ph, 2w+pw, c] = phase_outs[ph][pw][n, h, w, c]
    stacked = jnp.stack([jnp.stack(row, axis=3) for row in phase_outs], axis=2)
    return stacked.reshape(N, OH, OW, Cout)


def conv2d_same_nhwc(x, w, b):
    """Conv2d(C, C, 3, stride=1, pad=1) ('extra' layers) via bf16 im2col."""
    N, H, W, Cin = x.shape
    Cout, Cin2, k, _ = w.shape
    assert Cin2 == Cin
    p = (k - 1) // 2
    xb = x.astype(jnp.bfloat16)
    xp = jnp.pad(xb, ((0, 0), (p, p), (p, p), (0, 0)))
    pats = [xp[:, kh:kh + H, kw:kw + W, :] for kh in range(k) for kw in range(k)]
    pmat = jnp.concatenate(pats, axis=-1).reshape(N * H * W, k * k * Cin)
    w_flat = jnp.transpose(w, (2, 3, 1, 0)).reshape(k * k * Cin, Cout)
    y = matmul_bias(pmat, w_flat, b)
    return y.reshape(N, H, W, Cout)


# ----------------------------------------------------------------------------
# DCGAN_G: parameter construction (deterministic) + forward
# ----------------------------------------------------------------------------
def build_dcgan_g_params(key, isize, nz, nc, ngf, n_extra_layers=0):
    assert isize % 16 == 0, "isize has to be a multiple of 16"
    cngf, tisize = ngf // 2, 4
    while tisize < isize:
        cngf *= 2
        tisize *= 2

    keys = iter(jax.random.split(key, 128))

    def nrm(shape, scale=0.05):
        return scale * jax.random.normal(next(keys), shape, jnp.float32)

    layers = []
    layers.append(("initial", {
        "w": nrm((nz, cngf, 4, 4)), "b": nrm((cngf,)),
        "gamma": jnp.ones((cngf,), jnp.float32), "beta": jnp.zeros((cngf,), jnp.float32),
    }))
    csize = 4
    while csize < isize // 2:
        layers.append(("pyramid", {
            "w": nrm((cngf, cngf // 2, 4, 4)), "b": nrm((cngf // 2,)),
            "gamma": jnp.ones((cngf // 2,), jnp.float32),
            "beta": jnp.zeros((cngf // 2,), jnp.float32),
        }))
        cngf //= 2
        csize *= 2
    for _ in range(n_extra_layers):
        layers.append(("extra", {
            "w": nrm((cngf, cngf, 3, 3)), "b": nrm((cngf,)),
            "gamma": jnp.ones((cngf,), jnp.float32),
            "beta": jnp.zeros((cngf,), jnp.float32),
        }))
    layers.append(("final", {"w": nrm((cngf, nc, 4, 4)), "b": nrm((nc,))}))
    return layers


def dcgan_g_forward(x, layers):
    # TODO(synk): the ngpu>1 nn.parallel.data_parallel branch is a device-placement
    # detail with no single-kernel equivalent; single-device path implemented.
    h = x
    for kind, p in layers:
        if kind == "initial":
            h = initial_convt_nhwc(h, p["w"], p["b"])
            h = batchnorm_relu_nhwc(h, p["gamma"], p["beta"])
        elif kind == "pyramid":
            h = conv_transpose_s2_nhwc(h, p["w"], p["b"])
            h = batchnorm_relu_nhwc(h, p["gamma"], p["beta"])
        elif kind == "extra":
            h = conv2d_same_nhwc(h, p["w"], p["b"])
            h = batchnorm_relu_nhwc(h, p["gamma"], p["beta"])
        elif kind == "final":
            h = conv_transpose_s2_nhwc(h, p["w"], p["b"], activation="tanh",
                                       out_dtype=jnp.float32)
    return jnp.transpose(h, (0, 3, 1, 2))      # back to NCHW (PyTorch layout)


if __name__ == "__main__":
    # Small config: isize=16, nz=8, nc=3, ngf=8, 1 extra layer, batch=2.
    isize, nz, nc, ngf, n_extra = 16, 8, 3, 8, 1
    key = jax.random.PRNGKey(0)
    k_param, k_in = jax.random.split(key)

    layers = build_dcgan_g_params(k_param, isize, nz, nc, ngf, n_extra)
    x = jax.random.normal(k_in, (2, nz, 1, 1), jnp.float32)   # NCHW latent

    fwd = jax.jit(lambda z: dcgan_g_forward(z, layers))
    out = jax.block_until_ready(fwd(x))

    assert out.shape == (2, nc, isize, isize), out.shape
    assert out.dtype == jnp.float32
    assert bool(jnp.all(jnp.isfinite(out)))
    assert bool(jnp.all(jnp.abs(out) <= 1.0))       # tanh range
    print("KERNEL_OK")
</pallas_src>

<mosaic_0001>
module attributes {stable_mosaic.version = 11 : i64} {
  func.func @_matmul_bias_kernel(%arg0: i32, %arg1: i32, %arg2: i32, %arg3: memref<8x128xbf16, #tpu.memory_space<vmem>>, %arg4: memref<128x256xbf16, #tpu.memory_space<vmem>>, %arg5: memref<1x256xf32, #tpu.memory_space<vmem>>, %arg6: memref<8x256xf32, #tpu.memory_space<vmem>>, %arg7: memref<8x256xf32, #tpu.memory_space<vmem>>) attributes {dimension_semantics = [#tpu.dimension_semantics<parallel>, #tpu.dimension_semantics<parallel>, #tpu.dimension_semantics<arbitrary>], iteration_bounds = array<i64: 1, 1, 1>, scalar_prefetch = 0 : i64, scratch_operands = 1 : i64, tpu.core_type = #tpu.core_type<tc>, window_params = [{transform_indices = @transform_0, window_bounds = array<i64: 8, 128>}, {transform_indices = @transform_1, window_bounds = array<i64: 128, 256>}, {transform_indices = @transform_2, window_bounds = array<i64: 1, 256>}, {transform_indices = @transform_3, window_bounds = array<i64: 8, 256>}]} {
    %c0_i32 = arith.constant 0 : i32
    %0 = arith.cmpi eq, %arg2, %c0_i32 : i32
    %1 = arith.extui %0 : i1 to i32
    %c0_i32_0 = arith.constant 0 : i32
    %2 = arith.cmpi ne, %1, %c0_i32_0 : i32
    scf.if %2 {
      %cst_10 = arith.constant 0.000000e+00 : f32
      %12 = vector.broadcast %cst_10 : f32 to vector<8x256xf32>
      %c0_11 = arith.constant 0 : index
      %c0_12 = arith.constant 0 : index
      %13 = vector.load %arg7[%c0_11, %c0_12] : memref<8x256xf32, #tpu.memory_space<vmem>>, vector<8x256xf32>
      tpu.vector_store %arg7[%c0_11, %c0_12], %12 {strides = array<i32>} : memref<8x256xf32, #tpu.memory_space<vmem>>, vector<8x256xf32>,
    } else {
    }
    %c0 = arith.constant 0 : index
    %c0_1 = arith.constant 0 : index
    %3 = vector.load %arg7[%c0, %c0_1] : memref<8x256xf32, #tpu.memory_space<vmem>>, vector<8x256xf32>
    %c0_2 = arith.constant 0 : index
    %c0_3 = arith.constant 0 : index
    %4 = vector.load %arg3[%c0_2, %c0_3] : memref<8x128xbf16, #tpu.memory_space<vmem>>, vector<8x128xbf16>
    %c0_4 = arith.constant 0 : index
    %c0_5 = arith.constant 0 : index
    %5 = vector.load %arg4[%c0_4, %c0_5] : memref<128x256xbf16, #tpu.memory_space<vmem>>, vector<128x256xbf16>
    %cst = arith.constant dense<0.000000e+00> : vector<8x256xf32>
    %6 = tpu.matmul %4, %5, %cst {dimension_numbers = #tpu.dot_dimension_numbers<[1], [0], [0], [1], [0, 0, 1, 1], [], []>} : vector<8x128xbf16>, vector<128x256xbf16>, vector<8x256xf32> -> vector<8x256xf32>
    %7 = arith.addf %3, %6 : vector<8x256xf32>
    %c0_6 = arith.constant 0 : index
    %c0_7 = arith.constant 0 : index
    %8 = vector.load %arg7[%c0_6, %c0_7] : memref<8x256xf32, #tpu.memory_space<vmem>>, vector<8x256xf32>
    tpu.vector_store %arg7[%c0_6, %c0_7], %7 {strides = array<i32>} : memref<8x256xf32, #tpu.memory_space<vmem>>, vector<8x256xf32>,
    %c0_i32_8 = arith.constant 0 : i32
    %9 = arith.cmpi eq, %arg2, %c0_i32_8 : i32
    %10 = arith.extui %9 : i1 to i32
    %c0_i32_9 = arith.constant 0 : i32
    %11 = arith.cmpi ne, %10, %c0_i32_9 : i32
    scf.if %11 {
      %c0_10 = arith.constant 0 : index
      %c0_11 = arith.constant 0 : index
      %12 = vector.load %arg7[%c0_10, %c0_11] : memref<8x256xf32, #tpu.memory_space<vmem>>, vector<8x256xf32>
      %c0_12 = arith.constant 0 : index
      %c0_13 = arith.constant 0 : index
      %13 = vector.load %arg5[%c0_12, %c0_13] : memref<1x256xf32, #tpu.memory_space<vmem>>, vector<1x256xf32>
      %14 = vector.broadcast %13 : vector<1x256xf32> to vector<8x256xf32>
      %15 = arith.addf %12, %14 : vector<8x256xf32>
      %c0_14 = arith.constant 0 : index
      %c0_15 = arith.constant 0 : index
      %16 = vector.load %arg6[%c0_14, %c0_15] : memref<8x256xf32, #tpu.memory_space<vmem>>, vector<8x256xf32>
      tpu.vector_store %arg6[%c0_14, %c0_15], %15 {strides = array<i32>} : memref<8x256xf32, #tpu.memory_space<vmem>>, vector<8x256xf32>,
    } else {
    }
    return
  }
  func.func @transform_0(%arg0: i32, %arg1: i32, %arg2: i32) -> (i32, i32) {
    %c0_i32 = arith.constant 0 : i32
    return %arg0, %arg2 : i32, i32
  }
  func.func @transform_1(%arg0: i32, %arg1: i32, %arg2: i32) -> (i32, i32) {
    %c0_i32 = arith.constant 0 : i32
    return %arg2, %arg1 : i32, i32
  }
  func.func @transform_2(%arg0: i32, %arg1: i32, %arg2: i32) -> (i32, i32) {
    %c0_i32 = arith.constant 0 : i32
    %c0_i32_0 = arith.constant 0 : i32
    return %c0_i32, %arg1 : i32, i32
  }
  func.func @transform_3(%arg0: i32, %arg1: i32, %arg2: i32) -> (i32, i32) {
    %c0_i32 = arith.constant 0 : i32
    return %arg0, %arg1 : i32, i32
  }
}

module attributes {stable_mosaic.version = 11 : i64} {
  func.func @_bn_stats_kernel(%arg0: i32, %arg1: memref<32x128xf32, #tpu.memory_space<vmem>>, %arg2: memref<1x128xf32, #tpu.memory_space<vmem>>, %arg3: memref<1x128xf32, #tpu.memory_space<vmem>>) attributes {dimension_semantics = [#tpu.dimension_semantics<arbitrary>], iteration_bounds = array<i64: 1>, scalar_prefetch = 0 : i64, scratch_operands = 0 : i64, tpu.core_type = #tpu.core_type<tc>, window_params = [{transform_indices = @transform_0, window_bounds = array<i64: 32, 128>}, {pipeline_mode = #tpu.pipeline_mode<synchronous>, transform_indices = @transform_1, window_bounds = array<i64: 1, 128>}, {pipeline_mode = #tpu.pipeline_mode<synchronous>, transform_indices = @transform_2, window_bounds = array<i64: 1, 128>}]} {
    %c0_i32 = arith.constant 0 : i32
    %0 = arith.cmpi eq, %arg0, %c0_i32 : i32
    %1 = arith.extui %0 : i1 to i32
    %c0_i32_0 = arith.constant 0 : i32
    %2 = arith.cmpi ne, %1, %c0_i32_0 : i32
    scf.if %2 {
      %cst_11 = arith.constant 0.000000e+00 : f32
      %15 = vector.broadcast %cst_11 : f32 to vector<1x128xf32>
      %c0_12 = arith.constant 0 : index
      %c0_13 = arith.constant 0 : index
      %16 = vector.load %arg2[%c0_12, %c0_13] : memref<1x128xf32, #tpu.memory_space<vmem>>, vector<1x128xf32>
      tpu.vector_store %arg2[%c0_12, %c0_13], %15 {strides = array<i32>} : memref<1x128xf32, #tpu.memory_space<vmem>>, vector<1x128xf32>,
      %cst_14 = arith.constant 0.000000e+00 : f32
      %17 = vector.broadcast %cst_14 : f32 to vector<1x128xf32>
      %c0_15 = arith.constant 0 : index
      %c0_16 = arith.constant 0 : index
      %18 = vector.load %arg3[%c0_15, %c0_16] : memref<1x128xf32, #tpu.memory_space<vmem>>, vector<1x128xf32>
      tpu.vector_store %arg3[%c0_15, %c0_16], %17 {strides = array<i32>} : memref<1x128xf32, #tpu.memory_space<vmem>>, vector<1x128xf32>,
    } else {
    }
    %c0 = arith.constant 0 : index
    %c0_1 = arith.constant 0 : index
    %3 = vector.load %arg1[%c0, %c0_1] : memref<32x128xf32, #tpu.memory_space<vmem>>, vector<32x128xf32>
    %c0_2 = arith.constant 0 : index
    %c0_3 = arith.constant 0 : index
    %4 = vector.load %arg2[%c0_2, %c0_3] : memref<1x128xf32, #tpu.memory_space<vmem>>, vector<1x128xf32>
    %cst = arith.constant dense<0.000000e+00> : vector<128xf32>
    %5 = vector.multi_reduction <add>, %3, %cst [0] : vector<32x128xf32> to vector<128xf32>
    %6 = vector.shape_cast %5 : vector<128xf32> to vector<1x128xf32>
    %7 = arith.addf %4, %6 : vector<1x128xf32>
    %c0_4 = arith.constant 0 : index
    %c0_5 = arith.constant 0 : index
    %8 = vector.load %arg2[%c0_4, %c0_5] : memref<1x128xf32, #tpu.memory_space<vmem>>, vector<1x128xf32>
    tpu.vector_store %arg2[%c0_4, %c0_5], %7 {strides = array<i32>} : memref<1x128xf32, #tpu.memory_space<vmem>>, vector<1x128xf32>,
    %c0_6 = arith.constant 0 : index
    %c0_7 = arith.constant 0 : index
    %9 = vector.load %arg3[%c0_6, %c0_7] : memref<1x128xf32, #tpu.memory_space<vmem>>, vector<1x128xf32>
    %10 = arith.mulf %3, %3 : vector<32x128xf32>
    %cst_8 = arith.constant dense<0.000000e+00> : vector<128xf32>
    %11 = vector.multi_reduction <add>, %10, %cst_8 [0] : vector<32x128xf32> to vector<128xf32>
    %12 = vector.shape_cast %11 : vector<128xf32> to vector<1x128xf32>
    %13 = arith.addf %9, %12 : vector<1x128xf32>
    %c0_9 = arith.constant 0 : index
    %c0_10 = arith.constant 0 : index
    %14 = vector.load %arg3[%c0_9, %c0_10] : memref<1x128xf32, #tpu.memory_space<vmem>>, vector<1x128xf32>
    tpu.vector_store %arg3[%c0_9, %c0_10], %13 {strides = array<i32>} : memref<1x128xf32, #tpu.memory_space<vmem>>, vector<1x128xf32>,
    return
  }
  func.func @transform_0(%arg0: i32) -> (i32, i32) {
    %c0_i32 = arith.constant 0 : i32
    %c0_i32_0 = arith.constant 0 : i32
    return %arg0, %c0_i32 : i32, i32
  }
  func.func @transform_1(%arg0: i32) -> (i32, i32) {
    %c0_i32 = arith.constant 0 : i32
    %c0_i32_0 = arith.constant 0 : i32
    %c0_i32_1 = arith.constant 0 : i32
    return %c0_i32, %c0_i32_0 : i32, i32
  }
  func.func @transform_2(%arg0: i32) -> (i32, i32) {
    %c0_i32 = arith.constant 0 : i32
    %c0_i32_0 = arith.constant 0 : i32
    %c0_i32_1 = arith.constant 0 : i32
    return %c0_i32, %c0_i32_0 : i32, i32
  }
}

module attributes {stable_mosaic.version = 11 : i64} {
  func.func @_bn_apply_relu_kernel(%arg0: i32, %arg1: memref<32x128xf32, #tpu.memory_space<vmem>>, %arg2: memref<1x128xf32, #tpu.memory_space<vmem>>, %arg3: memref<1x128xf32, #tpu.memory_space<vmem>>, %arg4: memref<32x128xbf16, #tpu.memory_space<vmem>>) attributes {dimension_semantics = [#tpu.dimension_semantics<parallel>], iteration_bounds = array<i64: 1>, scalar_prefetch = 0 : i64, scratch_operands = 0 : i64, tpu.core_type = #tpu.core_type<tc>, window_params = [{transform_indices = @transform_0, window_bounds = array<i64: 32, 128>}, {pipeline_mode = #tpu.pipeline_mode<synchronous>, transform_indices = @transform_1, window_bounds = array<i64: 1, 128>}, {pipeline_mode = #tpu.pipeline_mode<synchronous>, transform_indices = @transform_2, window_bounds = array<i64: 1, 128>}, {transform_indices = @transform_3, window_bounds = array<i64: 32, 128>}]} {
    %c0 = arith.constant 0 : index
    %c0_0 = arith.constant 0 : index
    %0 = vector.load %arg1[%c0, %c0_0] : memref<32x128xf32, #tpu.memory_space<vmem>>, vector<32x128xf32>
    %c0_1 = arith.constant 0 : index
    %c0_2 = arith.constant 0 : index
    %1 = vector.load %arg2[%c0_1, %c0_2] : memref<1x128xf32, #tpu.memory_space<vmem>>, vector<1x128xf32>
    %2 = vector.broadcast %1 : vector<1x128xf32> to vector<32x128xf32>
    %3 = arith.mulf %0, %2 : vector<32x128xf32>
    %c0_3 = arith.constant 0 : index
    %c0_4 = arith.constant 0 : index
    %4 = vector.load %arg3[%c0_3, %c0_4] : memref<1x128xf32, #tpu.memory_space<vmem>>, vector<1x128xf32>
    %5 = vector.broadcast %4 : vector<1x128xf32> to vector<32x128xf32>
    %6 = arith.addf %3, %5 : vector<32x128xf32>
    %cst = arith.constant 0.000000e+00 : f32
    %7 = vector.broadcast %cst : f32 to vector<32x128xf32>
    %8 = arith.maximumf %6, %7 : vector<32x128xf32>
    %9 = arith.truncf %8 : vector<32x128xf32> to vector<32x128xbf16>
    %c0_5 = arith.constant 0 : index
    %c0_6 = arith.constant 0 : index
    %10 = vector.load %arg4[%c0_5, %c0_6] : memref<32x128xbf16, #tpu.memory_space<vmem>>, vector<32x128xbf16>
    tpu.vector_store %arg4[%c0_5, %c0_6], %9 {strides = array<i32>} : memref<32x128xbf16, #tpu.memory_space<vmem>>, vector<32x128xbf16>,
    return
  }
  func.func @transform_0(%arg0: i32) -> (i32, i32) {
    %c0_i32 = arith.constant 0 : i32
    %c0_i32_0 = arith.constant 0 : i32
    return %arg0, %c0_i32 : i32, i32
  }
  func.func @transform_1(%arg0: i32) -> (i32, i32) {
    %c0_i32 = arith.constant 0 : i32
    %c0_i32_0 = arith.constant 0 : i32
    %c0_i32_1 = arith.constant 0 : i32
    return %c0_i32, %c0_i32_0 : i32, i32
  }
  func.func @transform_2(%arg0: i32) -> (i32, i32) {
    %c0_i32 = arith.constant 0 : i32
    %c0_i32_0 = arith.constant 0 : i32
    %c0_i32_1 = arith.constant 0 : i32
    return %c0_i32, %c0_i32_0 : i32, i32
  }
  func.func @transform_3(%arg0: i32) -> (i32, i32) {
    %c0_i32 = arith.constant 0 : i32
    %c0_i32_0 = arith.constant 0 : i32
    return %arg0, %c0_i32 : i32, i32
  }
}

module attributes {stable_mosaic.version = 11 : i64} {
  func.func @_matmul_bias_kernel(%arg0: i32, %arg1: i32, %arg2: i32, %arg3: memref<32x128xbf16, #tpu.memory_space<vmem>>, %arg4: memref<128x128xbf16, #tpu.memory_space<vmem>>, %arg5: memref<1x128xf32, #tpu.memory_space<vmem>>, %arg6: memref<32x128xf32, #tpu.memory_space<vmem>>, %arg7: memref<32x128xf32, #tpu.memory_space<vmem>>) attributes {dimension_semantics = [#tpu.dimension_semantics<parallel>, #tpu.dimension_semantics<parallel>, #tpu.dimension_semantics<arbitrary>], iteration_bounds = array<i64: 1, 1, 1>, scalar_prefetch = 0 : i64, scratch_operands = 1 : i64, tpu.core_type = #tpu.core_type<tc>, window_params = [{transform_indices = @transform_0, window_bounds = array<i64: 32, 128>}, {transform_indices = @transform_1, window_bounds = array<i64: 128, 128>}, {transform_indices = @transform_2, window_bounds = array<i64: 1, 128>}, {transform_indices = @transform_3, window_bounds = array<i64: 32, 128>}]} {
    %c0_i32 = arith.constant 0 : i32
    %0 = arith.cmpi eq, %arg2, %c0_i32 : i32
    %1 = arith.extui %0 : i1 to i32
    %c0_i32_0 = arith.constant 0 : i32
    %2 = arith.cmpi ne, %1, %c0_i32_0 : i32
    scf.if %2 {
      %cst_10 = arith.constant 0.000000e+00 : f32
      %12 = vector.broadcast %cst_10 : f32 to vector<32x128xf32>
      %c0_11 = arith.constant 0 : index
      %c0_12 = arith.constant 0 : index
      %13 = vector.load %arg7[%c0_11, %c0_12] : memref<32x128xf32, #tpu.memory_space<vmem>>, vector<32x128xf32>
      tpu.vector_store %arg7[%c0_11, %c0_12], %12 {strides = array<i32>} : memref<32x128xf32, #tpu.memory_space<vmem>>, vector<32x128xf32>,
    } else {
    }
    %c0 = arith.constant 0 : index
    %c0_1 = arith.constant 0 : index
    %3 = vector.load %arg7[%c0, %c0_1] : memref<32x128xf32, #tpu.memory_space<vmem>>, vector<32x128xf32>
    %c0_2 = arith.constant 0 : index
    %c0_3 = arith.constant 0 : index
    %4 = vector.load %arg3[%c0_2, %c0_3] : memref<32x128xbf16, #tpu.memory_space<vmem>>, vector<32x128xbf16>
    %c0_4 = arith.constant 0 : index
    %c0_5 = arith.constant 0 : index
    %5 = vector.load %arg4[%c0_4, %c0_5] : memref<128x128xbf16, #tpu.memory_space<vmem>>, vector<128x128xbf16>
    %cst = arith.constant dense<0.000000e+00> : vector<32x128xf32>
    %6 = tpu.matmul %4, %5, %cst {dimension_numbers = #tpu.dot_dimension_numbers<[1], [0], [0], [1], [0, 0, 1, 1], [], []>} : vector<32x128xbf16>, vector<128x128xbf16>, vector<32x128xf32> -> vector<32x128xf32>
    %7 = arith.addf %3, %6 : vector<32x128xf32>
    %c0_6 = arith.constant 0 : index
    %c0_7 = arith.constant 0 : index
    %8 = vector.load %arg7[%c0_6, %c0_7] : memref<32x128xf32, #tpu.memory_space<vmem>>, vector<32x128xf32>
    tpu.vector_store %arg7[%c0_6, %c0_7], %7 {strides = array<i32>} : memref<32x128xf32, #tpu.memory_space<vmem>>, vector<32x128xf32>,
    %c0_i32_8 = arith.constant 0 : i32
    %9 = arith.cmpi eq, %arg2, %c0_i32_8 : i32
    %10 = arith.extui %9 : i1 to i32
    %c0_i32_9 = arith.constant 0 : i32
    %11 = arith.cmpi ne, %10, %c0_i32_9 : i32
    scf.if %11 {
      %c0_10 = arith.constant 0 : index
      %c0_11 = arith.constant 0 : index
      %12 = vector.load %arg7[%c0_10, %c0_11] : memref<32x128xf32, #tpu.memory_space<vmem>>, vector<32x128xf32>
      %c0_12 = arith.constant 0 : index
      %c0_13 = arith.constant 0 : index
      %13 = vector.load %arg5[%c0_12, %c0_13] : memref<1x128xf32, #tpu.memory_space<vmem>>, vector<1x128xf32>
      %14 = vector.broadcast %13 : vector<1x128xf32> to vector<32x128xf32>
      %15 = arith.addf %12, %14 : vector<32x128xf32>
      %c0_14 = arith.constant 0 : index
      %c0_15 = arith.constant 0 : index
      %16 = vector.load %arg6[%c0_14, %c0_15] : memref<32x128xf32, #tpu.memory_space<vmem>>, vector<32x128xf32>
      tpu.vector_store %arg6[%c0_14, %c0_15], %15 {strides = array<i32>} : memref<32x128xf32, #tpu.memory_space<vmem>>, vector<32x128xf32>,
    } else {
    }
    return
  }
  func.func @transform_0(%arg0: i32, %arg1: i32, %arg2: i32) -> (i32, i32) {
    %c0_i32 = arith.constant 0 : i32
    return %arg0, %arg2 : i32, i32
  }
  func.func @transform_1(%arg0: i32, %arg1: i32, %arg2: i32) -> (i32, i32) {
    %c0_i32 = arith.constant 0 : i32
    return %arg2, %arg1 : i32, i32
  }
  func.func @transform_2(%arg0: i32, %arg1: i32, %arg2: i32) -> (i32, i32) {
    %c0_i32 = arith.constant 0 : i32
    %c0_i32_0 = arith.constant 0 : i32
    return %c0_i32, %arg1 : i32, i32
  }
  func.func @transform_3(%arg0: i32, %arg1: i32, %arg2: i32) -> (i32, i32) {
    %c0_i32 = arith.constant 0 : i32
    return %arg0, %arg1 : i32, i32
  }
}

module attributes {stable_mosaic.version = 11 : i64} {
  func.func @_bn_stats_kernel(%arg0: i32, %arg1: memref<128x128xf32, #tpu.memory_space<vmem>>, %arg2: memref<1x128xf32, #tpu.memory_space<vmem>>, %arg3: memref<1x128xf32, #tpu.memory_space<vmem>>) attributes {dimension_semantics = [#tpu.dimension_semantics<arbitrary>], iteration_bounds = array<i64: 1>, scalar_prefetch = 0 : i64, scratch_operands = 0 : i64, tpu.core_type = #tpu.core_type<tc>, window_params = [{transform_indices = @transform_0, window_bounds = array<i64: 128, 128>}, {pipeline_mode = #tpu.pipeline_mode<synchronous>, transform_indices = @transform_1, window_bounds = array<i64: 1, 128>}, {pipeline_mode = #tpu.pipeline_mode<synchronous>, transform_indices = @transform_2, window_bounds = array<i64: 1, 128>}]} {
    %c0_i32 = arith.constant 0 : i32
    %0 = arith.cmpi eq, %arg0, %c0_i32 : i32
    %1 = arith.extui %0 : i1 to i32
    %c0_i32_0 = arith.constant 0 : i32
    %2 = arith.cmpi ne, %1, %c0_i32_0 : i32
    scf.if %2 {
      %cst_11 = arith.constant 0.000000e+00 : f32
      %15 = vector.broadcast %cst_11 : f32 to vector<1x128xf32>
      %c0_12 = arith.constant 0 : index
      %c0_13 = arith.constant 0 : index
      %16 = vector.load %arg2[%c0_12, %c0_13] : memref<1x128xf32, #tpu.memory_space<vmem>>, vector<1x128xf32>
      tpu.vector_store %arg2[%c0_12, %c0_13], %15 {strides = array<i32>} : memref<1x128xf32, #tpu.memory_space<vmem>>, vector<1x128xf32>,
      %cst_14 = arith.constant 0.000000e+00 : f32
      %17 = vector.broadcast %cst_14 : f32 to vector<1x128xf32>
      %c0_15 = arith.constant 0 : index
      %c0_16 = arith.constant 0 : index
      %18 = vector.load %arg3[%c0_15, %c0_16] : memref<1x128xf32, #tpu.memory_space<vmem>>, vector<1x128xf32>
      tpu.vector_store %arg3[%c0_15, %c0_16], %17 {strides = array<i32>} : memref<1x128xf32, #tpu.memory_space<vmem>>, vector<1x128xf32>,
    } else {
    }
    %c0 = arith.constant 0 : index
    %c0_1 = arith.constant 0 : index
    %3 = vector.load %arg1[%c0, %c0_1] : memref<128x128xf32, #tpu.memory_space<vmem>>, vector<128x128xf32>
    %c0_2 = arith.constant 0 : index
    %c0_3 = arith.constant 0 : index
    %4 = vector.load %arg2[%c0_2, %c0_3] : memref<1x128xf32, #tpu.memory_space<vmem>>, vector<1x128xf32>
    %cst = arith.constant dense<0.000000e+00> : vector<128xf32>
    %5 = vector.multi_reduction <add>, %3, %cst [0] : vector<128x128xf32> to vector<128xf32>
    %6 = vector.shape_cast %5 : vector<128xf32> to vector<1x128xf32>
    %7 = arith.addf %4, %6 : vector<1x128xf32>
    %c0_4 = arith.constant 0 : index
    %c0_5 = arith.constant 0 : index
    %8 = vector.load %arg2[%c0_4, %c0_5] : memref<1x128xf32, #tpu.memory_space<vmem>>, vector<1x128xf32>
    tpu.vector_store %arg2[%c0_4, %c0_5], %7 {strides = array<i32>} : memref<1x128xf32, #tpu.memory_space<vmem>>, vector<1x128xf32>,
    %c0_6 = arith.constant 0 : index
    %c0_7 = arith.constant 0 : index
    %9 = vector.load %arg3[%c0_6, %c0_7] : memref<1x128xf32, #tpu.memory_space<vmem>>, vector<1x128xf32>
    %10 = arith.mulf %3, %3 : vector<128x128xf32>
    %cst_8 = arith.constant dense<0.000000e+00> : vector<128xf32>
    %11 = vector.multi_reduction <add>, %10, %cst_8 [0] : vector<128x128xf32> to vector<128xf32>
    %12 = vector.shape_cast %11 : vector<128xf32> to vector<1x128xf32>
    %13 = arith.addf %9, %12 : vector<1x128xf32>
    %c0_9 = arith.constant 0 : index
    %c0_10 = arith.constant 0 : index
    %14 = vector.load %arg3[%c0_9, %c0_10] : memref<1x128xf32, #tpu.memory_space<vmem>>, vector<1x128xf32>
    tpu.vector_store %arg3[%c0_9, %c0_10], %13 {strides = array<i32>} : memref<1x128xf32, #tpu.memory_space<vmem>>, vector<1x128xf32>,
    return
  }
  func.func @transform_0(%arg0: i32) -> (i32, i32) {
    %c0_i32 = arith.constant 0 : i32
    %c0_i32_0 = arith.constant 0 : i32
    return %arg0, %c0_i32 : i32, i32
  }
  func.func @transform_1(%arg0: i32) -> (i32, i32) {
    %c0_i32 = arith.constant 0 : i32
    %c0_i32_0 = arith.constant 0 : i32
    %c0_i32_1 = arith.constant 0 : i32
    return %c0_i32, %c0_i32_0 : i32, i32
  }
  func.func @transform_2(%arg0: i32) -> (i32, i32) {
    %c0_i32 = arith.constant 0 : i32
    %c0_i32_0 = arith.constant 0 : i32
    %c0_i32_1 = arith.constant 0 : i32
    return %c0_i32, %c0_i32_0 : i32, i32
  }
}

module attributes {stable_mosaic.version = 11 : i64} {
  func.func @_matmul_bias_kernel(%arg0: i32, %arg1: i32, %arg2: i32, %arg3: memref<128x128xbf16, #tpu.memory_space<vmem>>, %arg4: memref<128x128xbf16, #tpu.memory_space<vmem>>, %arg5: memref<1x128xf32, #tpu.memory_space<vmem>>, %arg6: memref<128x128xf32, #tpu.memory_space<vmem>>, %arg7: memref<128x128xf32, #tpu.memory_space<vmem>>) attributes {dimension_semantics = [#tpu.dimension_semantics<parallel>, #tpu.dimension_semantics<parallel>, #tpu.dimension_semantics<arbitrary>], iteration_bounds = array<i64: 1, 1, 1>, scalar_prefetch = 0 : i64, scratch_operands = 1 : i64, tpu.core_type = #tpu.core_type<tc>, window_params = [{transform_indices = @transform_0, window_bounds = array<i64: 128, 128>}, {transform_indices = @transform_1, window_bounds = array<i64: 128, 128>}, {transform_indices = @transform_2, window_bounds = array<i64: 1, 128>}, {transform_indices = @transform_3, window_bounds = array<i64: 128, 128>}]} {
    %c0_i32 = arith.constant 0 : i32
    %0 = arith.cmpi eq, %arg2, %c0_i32 : i32
    %1 = arith.extui %0 : i1 to i32
    %c0_i32_0 = arith.constant 0 : i32
    %2 = arith.cmpi ne, %1, %c0_i32_0 : i32
    scf.if %2 {
      %cst_10 = arith.constant 0.000000e+00 : f32
      %12 = vector.broadcast %cst_10 : f32 to vector<128x128xf32>
      %c0_11 = arith.constant 0 : index
      %c0_12 = arith.constant 0 : index
      %13 = vector.load %arg7[%c0_11, %c0_12] : memref<128x128xf32, #tpu.memory_space<vmem>>, vector<128x128xf32>
      tpu.vector_store %arg7[%c0_11, %c0_12], %12 {strides = array<i32>} : memref<128x128xf32, #tpu.memory_space<vmem>>, vector<128x128xf32>,
    } else {
    }
    %c0 = arith.constant 0 : index
    %c0_1 = arith.constant 0 : index
    %3 = vector.load %arg7[%c0, %c0_1] : memref<128x128xf32, #tpu.memory_space<vmem>>, vector<128x128xf32>
    %c0_2 = arith.constant 0 : index
    %c0_3 = arith.constant 0 : index
    %4 = vector.load %arg3[%c0_2, %c0_3] : memref<128x128xbf16, #tpu.memory_space<vmem>>, vector<128x128xbf16>
    %c0_4 = arith.constant 0 : index
    %c0_5 = arith.constant 0 : index
    %5 = vector.load %arg4[%c0_4, %c0_5] : memref<128x128xbf16, #tpu.memory_space<vmem>>, vector<128x128xbf16>
    %cst = arith.constant dense<0.000000e+00> : vector<128x128xf32>
    %6 = tpu.matmul %4, %5, %cst {dimension_numbers = #tpu.dot_dimension_numbers<[1], [0], [0], [1], [0, 0, 1, 1], [], []>} : vector<128x128xbf16>, vector<128x128xbf16>, vector<128x128xf32> -> vector<128x128xf32>
    %7 = arith.addf %3, %6 : vector<128x128xf32>
    %c0_6 = arith.constant 0 : index
    %c0_7 = arith.constant 0 : index
    %8 = vector.load %arg7[%c0_6, %c0_7] : memref<128x128xf32, #tpu.memory_space<vmem>>, vector<128x128xf32>
    tpu.vector_store %arg7[%c0_6, %c0_7], %7 {strides = array<i32>} : memref<128x128xf32, #tpu.memory_space<vmem>>, vector<128x128xf32>,
    %c0_i32_8 = arith.constant 0 : i32
    %9 = arith.cmpi eq, %arg2, %c0_i32_8 : i32
    %10 = arith.extui %9 : i1 to i32
    %c0_i32_9 = arith.constant 0 : i32
    %11 = arith.cmpi ne, %10, %c0_i32_9 : i32
    scf.if %11 {
      %c0_10 = arith.constant 0 : index
      %c0_11 = arith.constant 0 : index
      %12 = vector.load %arg7[%c0_10, %c0_11] : memref<128x128xf32, #tpu.memory_space<vmem>>, vector<128x128xf32>
      %c0_12 = arith.constant 0 : index
      %c0_13 = arith.constant 0 : index
      %13 = vector.load %arg5[%c0_12, %c0_13] : memref<1x128xf32, #tpu.memory_space<vmem>>, vector<1x128xf32>
      %14 = vector.broadcast %13 : vector<1x128xf32> to vector<128x128xf32>
      %15 = arith.addf %12, %14 : vector<128x128xf32>
      %c0_14 = arith.constant 0 : index
      %c0_15 = arith.constant 0 : index
      %16 = vector.load %arg6[%c0_14, %c0_15] : memref<128x128xf32, #tpu.memory_space<vmem>>, vector<128x128xf32>
      tpu.vector_store %arg6[%c0_14, %c0_15], %15 {strides = array<i32>} : memref<128x128xf32, #tpu.memory_space<vmem>>, vector<128x128xf32>,
    } else {
    }
    return
  }
  func.func @transform_0(%arg0: i32, %arg1: i32, %arg2: i32) -> (i32, i32) {
    %c0_i32 = arith.constant 0 : i32
    return %arg0, %arg2 : i32, i32
  }
  func.func @transform_1(%arg0: i32, %arg1: i32, %arg2: i32) -> (i32, i32) {
    %c0_i32 = arith.constant 0 : i32
    return %arg2, %arg1 : i32, i32
  }
  func.func @transform_2(%arg0: i32, %arg1: i32, %arg2: i32) -> (i32, i32) {
    %c0_i32 = arith.constant 0 : i32
    %c0_i32_0 = arith.constant 0 : i32
    return %c0_i32, %arg1 : i32, i32
  }
  func.func @transform_3(%arg0: i32, %arg1: i32, %arg2: i32) -> (i32, i32) {
    %c0_i32 = arith.constant 0 : i32
    return %arg0, %arg1 : i32, i32
  }
}

module attributes {stable_mosaic.version = 11 : i64} {
  func.func @_bn_apply_relu_kernel(%arg0: i32, %arg1: memref<128x128xf32, #tpu.memory_space<vmem>>, %arg2: memref<1x128xf32, #tpu.memory_space<vmem>>, %arg3: memref<1x128xf32, #tpu.memory_space<vmem>>, %arg4: memref<128x128xbf16, #tpu.memory_space<vmem>>) attributes {dimension_semantics = [#tpu.dimension_semantics<parallel>], iteration_bounds = array<i64: 1>, scalar_prefetch = 0 : i64, scratch_operands = 0 : i64, tpu.core_type = #tpu.core_type<tc>, window_params = [{transform_indices = @transform_0, window_bounds = array<i64: 128, 128>}, {pipeline_mode = #tpu.pipeline_mode<synchronous>, transform_indices = @transform_1, window_bounds = array<i64: 1, 128>}, {pipeline_mode = #tpu.pipeline_mode<synchronous>, transform_indices = @transform_2, window_bounds = array<i64: 1, 128>}, {transform_indices = @transform_3, window_bounds = array<i64: 128, 128>}]} {
    %c0 = arith.constant 0 : index
    %c0_0 = arith.constant 0 : index
    %0 = vector.load %arg1[%c0, %c0_0] : memref<128x128xf32, #tpu.memory_space<vmem>>, vector<128x128xf32>
    %c0_1 = arith.constant 0 : index
    %c0_2 = arith.constant 0 : index
    %1 = vector.load %arg2[%c0_1, %c0_2] : memref<1x128xf32, #tpu.memory_space<vmem>>, vector<1x128xf32>
    %2 = vector.broadcast %1 : vector<1x128xf32> to vector<128x128xf32>
    %3 = arith.mulf %0, %2 : vector<128x128xf32>
    %c0_3 = arith.constant 0 : index
    %c0_4 = arith.constant 0 : index
    %4 = vector.load %arg3[%c0_3, %c0_4] : memref<1x128xf32, #tpu.memory_space<vmem>>, vector<1x128xf32>
    %5 = vector.broadcast %4 : vector<1x128xf32> to vector<128x128xf32>
    %6 = arith.addf %3, %5 : vector<128x128xf32>
    %cst = arith.constant 0.000000e+00 : f32
    %7 = vector.broadcast %cst : f32 to vector<128x128xf32>
    %8 = arith.maximumf %6, %7 : vector<128x128xf32>
    %9 = arith.truncf %8 : vector<128x128xf32> to vector<128x128xbf16>
    %c0_5 = arith.constant 0 : index
    %c0_6 = arith.constant 0 : index
    %10 = vector.load %arg4[%c0_5, %c0_6] : memref<128x128xbf16, #tpu.memory_space<vmem>>, vector<128x128xbf16>
    tpu.vector_store %arg4[%c0_5, %c0_6], %9 {strides = array<i32>} : memref<128x128xbf16, #tpu.memory_space<vmem>>, vector<128x128xbf16>,
    return
  }
  func.func @transform_0(%arg0: i32) -> (i32, i32) {
    %c0_i32 = arith.constant 0 : i32
    %c0_i32_0 = arith.constant 0 : i32
    return %arg0, %c0_i32 : i32, i32
  }
  func.func @transform_1(%arg0: i32) -> (i32, i32) {
    %c0_i32 = arith.constant 0 : i32
    %c0_i32_0 = arith.constant 0 : i32
    %c0_i32_1 = arith.constant 0 : i32
    return %c0_i32, %c0_i32_0 : i32, i32
  }
  func.func @transform_2(%arg0: i32) -> (i32, i32) {
    %c0_i32 = arith.constant 0 : i32
    %c0_i32_0 = arith.constant 0 : i32
    %c0_i32_1 = arith.constant 0 : i32
    return %c0_i32, %c0_i32_0 : i32, i32
  }
  func.func @transform_3(%arg0: i32) -> (i32, i32) {
    %c0_i32 = arith.constant 0 : i32
    %c0_i32_0 = arith.constant 0 : i32
    return %arg0, %c0_i32 : i32, i32
  }
}

module attributes {stable_mosaic.version = 11 : i64} {
  func.func @_matmul_bias_kernel(%arg0: i32, %arg1: i32, %arg2: i32, %arg3: memref<128x128xbf16, #tpu.memory_space<vmem>>, %arg4: memref<128x128xbf16, #tpu.memory_space<vmem>>, %arg5: memref<1x128xf32, #tpu.memory_space<vmem>>, %arg6: memref<128x128xf32, #tpu.memory_space<vmem>>, %arg7: memref<128x128xf32, #tpu.memory_space<vmem>>) attributes {dimension_semantics = [#tpu.dimension_semantics<parallel>, #tpu.dimension_semantics<parallel>, #tpu.dimension_semantics<arbitrary>], iteration_bounds = array<i64: 1, 1, 1>, scalar_prefetch = 0 : i64, scratch_operands = 1 : i64, tpu.core_type = #tpu.core_type<tc>, window_params = [{transform_indices = @transform_0, window_bounds = array<i64: 128, 128>}, {transform_indices = @transform_1, window_bounds = array<i64: 128, 128>}, {transform_indices = @transform_2, window_bounds = array<i64: 1, 128>}, {transform_indices = @transform_3, window_bounds = array<i64: 128, 128>}]} {
    %c0_i32 = arith.constant 0 : i32
    %0 = arith.cmpi eq, %arg2, %c0_i32 : i32
    %1 = arith.extui %0 : i1 to i32
    %c0_i32_0 = arith.constant 0 : i32
    %2 = arith.cmpi ne, %1, %c0_i32_0 : i32
    scf.if %2 {
      %cst_10 = arith.constant 0.000000e+00 : f32
      %12 = vector.broadcast %cst_10 : f32 to vector<128x128xf32>
      %c0_11 = arith.constant 0 : index
      %c0_12 = arith.constant 0 : index
      %13 = vector.load %arg7[%c0_11, %c0_12] : memref<128x128xf32, #tpu.memory_space<vmem>>, vector<128x128xf32>
      tpu.vector_store %arg7[%c0_11, %c0_12], %12 {strides = array<i32>} : memref<128x128xf32, #tpu.memory_space<vmem>>, vector<128x128xf32>,
    } else {
    }
    %c0 = arith.constant 0 : index
    %c0_1 = arith.constant 0 : index
    %3 = vector.load %arg7[%c0, %c0_1] : memref<128x128xf32, #tpu.memory_space<vmem>>, vector<128x128xf32>
    %c0_2 = arith.constant 0 : index
    %c0_3 = arith.constant 0 : index
    %4 = vector.load %arg3[%c0_2, %c0_3] : memref<128x128xbf16, #tpu.memory_space<vmem>>, vector<128x128xbf16>
    %c0_4 = arith.constant 0 : index
    %c0_5 = arith.constant 0 : index
    %5 = vector.load %arg4[%c0_4, %c0_5] : memref<128x128xbf16, #tpu.memory_space<vmem>>, vector<128x128xbf16>
    %cst = arith.constant dense<0.000000e+00> : vector<128x128xf32>
    %6 = tpu.matmul %4, %5, %cst {dimension_numbers = #tpu.dot_dimension_numbers<[1], [0], [0], [1], [0, 0, 1, 1], [], []>} : vector<128x128xbf16>, vector<128x128xbf16>, vector<128x128xf32> -> vector<128x128xf32>
    %7 = arith.addf %3, %6 : vector<128x128xf32>
    %c0_6 = arith.constant 0 : index
    %c0_7 = arith.constant 0 : index
    %8 = vector.load %arg7[%c0_6, %c0_7] : memref<128x128xf32, #tpu.memory_space<vmem>>, vector<128x128xf32>
    tpu.vector_store %arg7[%c0_6, %c0_7], %7 {strides = array<i32>} : memref<128x128xf32, #tpu.memory_space<vmem>>, vector<128x128xf32>,
    %c0_i32_8 = arith.constant 0 : i32
    %9 = arith.cmpi eq, %arg2, %c0_i32_8 : i32
    %10 = arith.extui %9 : i1 to i32
    %c0_i32_9 = arith.constant 0 : i32
    %11 = arith.cmpi ne, %10, %c0_i32_9 : i32
    scf.if %11 {
      %c0_10 = arith.constant 0 : index
      %c0_11 = arith.constant 0 : index
      %12 = vector.load %arg7[%c0_10, %c0_11] : memref<128x128xf32, #tpu.memory_space<vmem>>, vector<128x128xf32>
      %c0_12 = arith.constant 0 : index
      %c0_13 = arith.constant 0 : index
      %13 = vector.load %arg5[%c0_12, %c0_13] : memref<1x128xf32, #tpu.memory_space<vmem>>, vector<1x128xf32>
      %14 = vector.broadcast %13 : vector<1x128xf32> to vector<128x128xf32>
      %15 = arith.addf %12, %14 : vector<128x128xf32>
      %16 = math.tanh %15 : vector<128x128xf32>
      %c0_14 = arith.constant 0 : index
      %c0_15 = arith.constant 0 : index
      %17 = vector.load %arg6[%c0_14, %c0_15] : memref<128x128xf32, #tpu.memory_space<vmem>>, vector<128x128xf32>
      tpu.vector_store %arg6[%c0_14, %c0_15], %16 {strides = array<i32>} : memref<128x128xf32, #tpu.memory_space<vmem>>, vector<128x128xf32>,
    } else {
    }
    return
  }
  func.func @transform_0(%arg0: i32, %arg1: i32, %arg2: i32) -> (i32, i32) {
    %c0_i32 = arith.constant 0 : i32
    return %arg0, %arg2 : i32, i32
  }
  func.func @transform_1(%arg0: i32, %arg1: i32, %arg2: i32) -> (i32, i32) {
    %c0_i32 = arith.constant 0 : i32
    return %arg2, %arg1 : i32, i32
  }
  func.func @transform_2(%arg0: i32, %arg1: i32, %arg2: i32) -> (i32, i32) {
    %c0_i32 = arith.constant 0 : i32
    %c0_i32_0 = arith.constant 0 : i32
    return %c0_i32, %arg1 : i32, i32
  }
  func.func @transform_3(%arg0: i32, %arg1: i32, %arg2: i32) -> (i32, i32) {
    %c0_i32 = arith.constant 0 : i32
    return %arg0, %arg1 : i32, i32
  }
}

</mosaic_0001>

<llo_original>
// kernel: tile.6
$region0: #{tile.6}
  #allocation0 [shape = 's32[1]{0}', space=sflag, size = 0x4, scoped, tag = 'scoped memory for tile.6']
  %s0 = inlined_call_operand.vmem [shape: f32[16], index: 0, kind: input, shape index: {}]
  %s1 = inlined_call_operand.vmem [shape: f32[16,16], index: 1, kind: output, shape index: {}]
  // Predicated region
  $region2: #{tile.6} parent=0 // pred_check
    _
  $region3: #{tile.6} parent=0 // pred_check_branch
    %3 = sbr.rel (0) target = $region5
  $region4: #{tile.6} parent=0 // pred_region
    _
  $region5: #{tile.6} parent=0 // pred_fallthru
    _
  %v4 = vld [vmem:[%s0] ss:$0 sm:$0xff]
  %5 = vst [vmem:[%s1] sm:$0xff] %v4
  %s6 = scalar_lea.vmem %s1, 8
  %7 = vst [vmem:[%s6] sm:$0xff] %v4

// kernel: tile.7
$region0: #{tile.7}
  %s0 = inlined_call_operand.vmem [shape: f32[16,16], index: 0, kind: input, shape index: {}]
  %s1 = inlined_call_operand.vmem [shape: f32[1,256], index: 1, kind: output, shape index: {}]
  $region1: #{tile.7} parent=0
    #allocation0 [shape = 'u8[8192]{0}', space=vmem, size = 0x2000, scoped, tag = 'scoped mem for output reshape']
    %s2 = smov 3
    %v3 = vld [vmem:[%s0] ss:$8 sm:%s2]
    %vm4 = vcmask 130048
    %5 = vst.msk [vmem:[#allocation0] ss:$8 sm:$0x3] %vm4, %v3
    %s6 = scalar_lea.vmem %s0, 7
    %s7 = smov 3
    %v8 = vld [vmem:[%s6] ss:$8 sm:%s7]
    %9 = vrot.lane.b32.xlu0 %v8, 112
    %v10 = vpop.permute.xlu0 %9
    %vm11 = vcmask 1048448
    %12 = vst.msk [vmem:[#allocation0] ss:$8 sm:$0x3] %vm11, %v10
    %s13 = scalar_lea.vmem %s0, 6
    %s14 = smov 3
    %v15 = vld [vmem:[%s13] ss:$8 sm:%s14]
    %16 = vrot.lane.b32.xlu0 %v15, 96
    %v17 = vpop.permute.xlu0 %16
    %vm18 = vcmask 917248
    %19 = vst.msk [vmem:[#allocation0] ss:$8 sm:$0x3] %vm18, %v17
    %s20 = scalar_lea.vmem %s0, 5
    %s21 = smov 3
    %v22 = vld [vmem:[%s20] ss:$8 sm:%s21]
    %23 = vrot.lane.b32.xlu0 %v22, 80
    %v24 = vpop.permute.xlu0 %23
    %vm25 = vcmask 786048
    %26 = vst.msk [vmem:[#allocation0] ss:$8 sm:$0x3] %vm25, %v24
    %s27 = scalar_lea.vmem %s0, 4
    %s28 = smov 3
    %v29 = vld [vmem:[%s27] ss:$8 sm:%s28]
    %30 = vrot.lane.b32.xlu0 %v29, 64
    %v31 = vpop.permute.xlu0 %30
    %vm32 = vcmask 654848
    %33 = vst.msk [vmem:[#allocation0] ss:$8 sm:$0x3] %vm32, %v31
    %s34 = scalar_lea.vmem %s0, 3
    %s35 = smov 3
    %v36 = vld [vmem:[%s34] ss:$8 sm:%s35]
    %37 = vrot.lane.b32.xlu0 %v36, 48
    %v38 = vpop.permute.xlu0 %37
    %vm39 = vcmask 523648
    %40 = vst.msk [vmem:[#allocation0] ss:$8 sm:$0x3] %vm39, %v38
    %s41 = scalar_lea.vmem %s0, 2
    %s42 = smov 3
    %v43 = vld [vmem:[%s41] ss:$8 sm:%s42]
    %44 = vrot.lane.b32.xlu0 %v43, 32
    %v45 = vpop.permute.xlu0 %44
    %vm46 = vcmask 392448
    %47 = vst.msk [vmem:[#allocation0] ss:$8 sm:$0x3] %vm46, %v45
    %s48 = scalar_lea.vmem %s0, 1
    %s49 = smov 3
    %v50 = vld [vmem:[%s48] ss:$8 sm:%s49]
    %51 = vrot.lane.b32.xlu0 %v50, 16
    %v52 = vpop.permute.xlu0 %51
    %vm53 = vcmask 261248
    %54 = vst.msk [vmem:[#allocation0] ss:$8 sm:$0x3] %vm53, %v52
    %s56 = sshllo.u32 0, 1
    %v58 = vld [vmem:[#allocation0] sm:%s56]
    %s59 = sshllo.u32 0, 1
    %60 = vst [vmem:[%s1] sm:%s59] %v58
    %s61 = scalar_lea.vmem [#allocation0], 8
    %v62 = vld [vmem:[%s61] sm:%s56]
    %s63 = sshllo.u32 0, 1
    %s64 = scalar_lea.vmem %s1, 1
    %65 = vst [vmem:[%s64] sm:%s63] %v62

// kernel: _lambda_.18
$region0: #{_lambda_.18}
  #allocation0 [shape = 'u32[]', space=smem, size = 0x4, offset = 0x4, fixed_abs, tag = 'smem constant byte address 0x4 - core index']
  #allocation1 [shape = 'u32[144,128]{1,0:T(1,128)}', space=vmem, size = 0x12000, scoped, tag = 'internal scratch']
  %s0 = inlined_call_operand.vmem [shape: f32[32,128], index: 0, kind: input, shape index: {}]
  %s1 = inlined_call_operand.vmem [shape: f32[1,128], index: 1, kind: input, shape index: {}]
  %s2 = inlined_call_operand.vmem [shape: f32[1,128], index: 2, kind: input, shape index: {}]
  %s3 = inlined_call_operand.vmem [shape: bf16[32,128], index: 3, kind: output, shape index: {}]
  %s4 = sld [smem:[#allocation0]]
  $region22: #{_lambda_.18} parent=0
    _
  %s6 = ssub.s32 1, %s4
  %s7 = scalar_select 0, %s6, %s4
  // Predicated region
  $region2: #{_lambda_.18} parent=0 // pred_check
    _
  $region3: #{_lambda_.18} parent=0 // pred_check_branch
    %9 = sbr.rel (0) target = $region5
  $region4: #{_lambda_.18} parent=0 // pred_region
    _
  $region5: #{_lambda_.18} parent=0 // pred_fallthru
    _
  // Predicated region
  $region6: #{_lambda_.18} parent=0 // pred_check
    _
  $region7: #{_lambda_.18} parent=0 // pred_check_branch
    %11 = sbr.rel (0) target = $region9
  $region8: #{_lambda_.18} parent=0 // pred_region
    _
  $region9: #{_lambda_.18} parent=0 // pred_fallthru
    _
  // Predicated region
  $region10: #{_lambda_.18} parent=0 // pred_check
    _
  $region11: #{_lambda_.18} parent=0 // pred_check_branch
    %13 = sbr.rel (0) target = $region13
  $region12: #{_lambda_.18} parent=0 // pred_region
    _
  $region13: #{_lambda_.18} parent=0 // pred_fallthru
    _
  %v14 = vld [vmem:[%s0] sm:$0xff]
  %v15 = vld [vmem:[%s0 + $0x8] sm:$0xff]
  %v16 = vld [vmem:[%s0 + $0x10] sm:$0xff]
  %v17 = vld [vmem:[%s0 + $0x18] sm:$0xff]
  %v18 = vld [vmem:[%s1] sm:$0x1]
  %v20 = vlaneseq
  %v21 = vshrl.u32 %v20, 7
  %v22 = vsub.s32 0, %v21
  %v23 = vrot.slane %v18, %v22
  %v25 = vmul.f32 %v14, %v23
  %v26 = vmul.f32 %v15, %v23
  %v27 = vmul.f32 %v16, %v23
  %v28 = vmul.f32 %v17, %v23
  %v29 = vld [vmem:[%s2] sm:$0x1]
  %v31 = vlaneseq
  %v32 = vshrl.u32 %v31, 7
  %v33 = vsub.s32 0, %v32
  %v34 = vrot.slane %v29, %v33
  %v36 = vadd.f32 %v25, %v34
  %v37 = vadd.f32 %v26, %v34
  %v38 = vadd.f32 %v27, %v34
  %v39 = vadd.f32 %v28, %v34
  %v40 = vmax.f32 %v36, 0.0
  %v41 = vmax.f32 %v37, 0.0
  %v42 = vmax.f32 %v38, 0.0
  %v43 = vmax.f32 %v39, 0.0
  %v44 = vpack.c.bf16 %v41, %v40
  %v45 = vpack.c.bf16 %v43, %v42
  %v48 = vunpack.c.l.b16 %v44
  %v49 = vunpack.c.h.b16 %v44
  %v50 = vunpack.c.l.b16 %v45
  %v51 = vunpack.c.h.b16 %v45
  %v52 = vpack.c.b16 %v48, %v48
  %v53 = vpack.c.b16 %v49, %v49
  %v54 = vpack.c.b16 %v50, %v50
  %v55 = vpack.c.b16 %v51, %v51
  %60 = vst [vmem:[%s3] sm:$0xf] %v52
  %61 = vst [vmem:[%s3 + $0x4] sm:$0xf] %v53
  %62 = vst [vmem:[%s3 + $0x8] sm:$0xf] %v54
  %63 = vst [vmem:[%s3 + $0xc] sm:$0xf] %v55
  // Predicated region
  $region14: #{_lambda_.18} parent=0 // pred_check
    _
  $region15: #{_lambda_.18} parent=0 // pred_check_branch
    %65 = sbr.rel (0) target = $region17
  $region16: #{_lambda_.18} parent=0 // pred_region
    _
  $region17: #{_lambda_.18} parent=0 // pred_fallthru
    _
  // Predicated region
  $region18: #{_lambda_.18} parent=0 // pred_check
    _
  $region19: #{_lambda_.18} parent=0 // pred_check_branch
    %67 = sbr.rel (0) target = $region21
  $region20: #{_lambda_.18} parent=0 // pred_region
    _
  $region21: #{_lambda_.18} parent=0 // pred_fallthru
    _

// kernel: _lambda_.17
$region0: #{_lambda_.17}
  #allocation0 [shape = 'u32[]', space=smem, size = 0x4, offset = 0x4, fixed_abs, tag = 'smem constant byte address 0x4 - core index']
  #allocation1 [shape = 'u32[144,128]{1,0:T(1,128)}', space=vmem, size = 0x12000, scoped, tag = 'internal scratch']
  %s0 = inlined_call_operand.vmem [shape: f32[32,128], index: 0, kind: input, shape index: {}]
  %s1 = inlined_call_operand.vmem [shape: f32[1,128], index: 1, kind: output, shape index: {0}]
  %s2 = inlined_call_operand.vmem [shape: f32[1,128], index: 2, kind: output, shape index: {1}]
  %3 = xla_tuple %s1, %s2
  %s4 = sld [smem:[#allocation0]]
  $region26: #{_lambda_.17} parent=0
    _
  %s6 = ssub.s32 1, %s4
  %s7 = scalar_select 0, %s6, %s4
  // Predicated region
  $region2: #{_lambda_.17} parent=0 // pred_check
    _
  $region3: #{_lambda_.17} parent=0 // pred_check_branch
    %9 = sbr.rel (0) target = $region5
  $region4: #{_lambda_.17} parent=0 // pred_region
    _
  $region5: #{_lambda_.17} parent=0 // pred_fallthru
    _
  %p10 = scmp.eq.s32.totalorder 0, 0
  // Predicated region
  $region6: #{_lambda_.17} parent=0 // pred_check
    %p11 = pneg %p10
  $region7: #{_lambda_.17} parent=0 // pred_check_branch
    %13 = sbr.rel (%p11) target = $region9
  $region8: #{_lambda_.17} parent=0 // pred_region
    %14 = vst [vmem:[%s1] sm:$0x1] 0.0
    %15 = vst [vmem:[%s2] sm:$0x1] 0.0
  $region9: #{_lambda_.17} parent=0 // pred_fallthru
    _
  %v16 = vld [vmem:[%s0] sm:$0xff]
  %v17 = vld [vmem:[%s0 + $0x8] sm:$0xff]
  %v18 = vld [vmem:[%s0 + $0x10] sm:$0xff]
  %v19 = vld [vmem:[%s0 + $0x18] sm:$0xff]
  %v20 = vld [vmem:[%s1] sm:$0x1]
  %v21 = vadd.f32 %v16, %v17
  %v22 = vadd.f32 %v21, %v18
  %v23 = vadd.f32 %v22, %v19
  %v24 = vrot.slane %v23, 4
  %v25 = vadd.f32 %v23, %v24
  %v26 = vrot.slane %v25, 2
  %v27 = vadd.f32 %v25, %v26
  %v28 = vrot.slane %v27, 1
  %v29 = vadd.f32 %v27, %v28
  %v30 = vadd.f32 %v20, %v29
  %31 = vst [vmem:[%s1] sm:$0x1] %v30
  %v32 = vld [vmem:[%s2] sm:$0x1]
  %v33 = vmul.f32 %v16, %v16
  %v34 = vmul.f32 %v17, %v17
  %v35 = vmul.f32 %v18, %v18
  %v36 = vmul.f32 %v19, %v19
  %v37 = vadd.f32 %v33, %v34
  %v38 = vadd.f32 %v37, %v35
  %v39 = vadd.f32 %v38, %v36
  %v40 = vrot.slane %v39, 4
  %v41 = vadd.f32 %v39, %v40
  %v42 = vrot.slane %v41, 2
  %v43 = vadd.f32 %v41, %v42
  %v44 = vrot.slane %v43, 1
  %v45 = vadd.f32 %v43, %v44
  %v46 = vadd.f32 %v32, %v45
  %47 = vst [vmem:[%s2] sm:$0x1] %v46
  // Predicated region
  $region10: #{_lambda_.17} parent=0 // pred_check
    _
  $region11: #{_lambda_.17} parent=0 // pred_check_branch
    %49 = sbr.rel (0) target = $region13
  $region12: #{_lambda_.17} parent=0 // pred_region
    _
  $region13: #{_lambda_.17} parent=0 // pred_fallthru
    _
  // Predicated region
  $region14: #{_lambda_.17} parent=0 // pred_check
    _
  $region15: #{_lambda_.17} parent=0 // pred_check_branch
    %51 = sbr.rel (0) target = $region17
  $region16: #{_lambda_.17} parent=0 // pred_region
    _
  $region17: #{_lambda_.17} parent=0 // pred_fallthru
    _
  // Predicated region
  $region18: #{_lambda_.17} parent=0 // pred_check
    _
  $region19: #{_lambda_.17} parent=0 // pred_check_branch
    %53 = sbr.rel (0) target = $region21
  $region20: #{_lambda_.17} parent=0 // pred_region
    _
  $region21: #{_lambda_.17} parent=0 // pred_fallthru
    _
  // Predicated region
  $region22: #{_lambda_.17} parent=0 // pred_check
    _
  $region23: #{_lambda_.17} parent=0 // pred_check_branch
    %55 = sbr.rel (0) target = $region25
  $region24: #{_lambda_.17} parent=0 // pred_region
    _
  $region25: #{_lambda_.17} parent=0 // pred_fallthru
    _

// kernel: _lambda_.16
$region0: #{_lambda_.16}
  #allocation0 [shape = 'u32[]', space=smem, size = 0x4, offset = 0x4, fixed_abs, tag = 'smem constant byte address 0x4 - core index']
  #allocation1 [shape = 'u32[144,128]{1,0:T(1,128)}', space=vmem, size = 0x12000, scoped, tag = 'internal scratch']
  #allocation2 [shape = 'f32[8,256]{1,0:T(8,128)}', space=vmem, size = 0x2000, scoped, tag = 'scratch operand']
  %s0 = inlined_call_operand.vmem [shape: bf16[8,128], index: 0, kind: input, shape index: {}]
  %s1 = inlined_call_operand.vmem [shape: bf16[128,256], index: 1, kind: input, shape index: {}]
  %s2 = inlined_call_operand.vmem [shape: f32[1,256], index: 2, kind: input, shape index: {}]
  %s3 = inlined_call_operand.vmem [shape: f32[8,256], index: 3, kind: output, shape index: {}]
  %s4 = sld [smem:[#allocation0]]
  $region30: #{_lambda_.16} parent=0
    _
  %s6 = ssub.s32 1, %s4
  %s7 = scalar_select 0, %s6, %s4
  // Predicated region
  $region2: #{_lambda_.16} parent=0 // pred_check
    _
  $region3: #{_lambda_.16} parent=0 // pred_check_branch
    %9 = sbr.rel (0) target = $region5
  $region4: #{_lambda_.16} parent=0 // pred_region
    _
  $region5: #{_lambda_.16} parent=0 // pred_fallthru
    _
  // Predicated region
  $region6: #{_lambda_.16} parent=0 // pred_check
    _
  $region7: #{_lambda_.16} parent=0 // pred_check_branch
    %11 = sbr.rel (0) target = $region9
  $region8: #{_lambda_.16} parent=0 // pred_region
    _
  $region9: #{_lambda_.16} parent=0 // pred_fallthru
    _
  // Predicated region
  $region10: #{_lambda_.16} parent=0 // pred_check
    _
  $region11: #{_lambda_.16} parent=0 // pred_check_branch
    %13 = sbr.rel (0) target = $region13
  $region12: #{_lambda_.16} parent=0 // pred_region
    _
  $region13: #{_lambda_.16} parent=0 // pred_fallthru
    _
  %p15 = scmp.eq.s32.totalorder 0, 0
  // Predicated region
  $region14: #{_lambda_.16} parent=0 // pred_check
    %p16 = pneg %p15
  $region15: #{_lambda_.16} parent=0 // pred_check_branch
    %18 = sbr.rel (%p16) target = $region17
  $region16: #{_lambda_.16} parent=0 // pred_region
    %19 = vst [vmem:[#allocation2] sm:$0xff] 0.0
    %20 = vst [vmem:[#allocation2 + $0x8] sm:$0xff] 0.0
  $region17: #{_lambda_.16} parent=0 // pred_fallthru
    _
  %v21 = vld [vmem:[#allocation2] sm:$0xff]
  %v22 = vld [vmem:[#allocation2 + $0x8] sm:$0xff]
  %v23 = vld [vmem:[%s0] sm:$0xf]
  %v24 = vld [vmem:[%s1] sm:$0xff]
  %v25 = vld [vmem:[%s1 + $0x8] sm:$0xff]
  %v26 = vld [vmem:[%s1 + $0x10] sm:$0xff]
  %v27 = vld [vmem:[%s1 + $0x18] sm:$0xff]
  %v28 = vld [vmem:[%s1 + $0x20] sm:$0xff]
  %v29 = vld [vmem:[%s1 + $0x28] sm:$0xff]
  %v30 = vld [vmem:[%s1 + $0x30] sm:$0xff]
  %v31 = vld [vmem:[%s1 + $0x38] sm:$0xff]
  %v32 = vld [vmem:[%s1 + $0x40] sm:$0xff]
  %v33 = vld [vmem:[%s1 + $0x48] sm:$0xff]
  %v34 = vld [vmem:[%s1 + $0x50] sm:$0xff]
  %v35 = vld [vmem:[%s1 + $0x58] sm:$0xff]
  %v36 = vld [vmem:[%s1 + $0x60] sm:$0xff]
  %v37 = vld [vmem:[%s1 + $0x68] sm:$0xff]
  %v38 = vld [vmem:[%s1 + $0x70] sm:$0xff]
  %v39 = vld [vmem:[%s1 + $0x78] sm:$0xff]
  %v56 = vunpack.c.l.b16 %v24
  %v57 = vunpack.c.h.b16 %v24
  %v58 = vunpack.c.l.b16 %v25
  %v59 = vunpack.c.h.b16 %v25
  %v60 = vunpack.c.l.b16 %v26
  %v61 = vunpack.c.h.b16 %v26
  %v62 = vunpack.c.l.b16 %v27
  %v63 = vunpack.c.h.b16 %v27
  %v64 = vunpack.c.l.b16 %v28
  %v65 = vunpack.c.h.b16 %v28
  %v66 = vunpack.c.l.b16 %v29
  %v67 = vunpack.c.h.b16 %v29
  %v68 = vunpack.c.l.b16 %v30
  %v69 = vunpack.c.h.b16 %v30
  %v70 = vunpack.c.l.b16 %v31
  %v71 = vunpack.c.h.b16 %v31
  %v72 = vunpack.c.l.b16 %v32
  %v73 = vunpack.c.h.b16 %v32
  %v74 = vunpack.c.l.b16 %v33
  %v75 = vunpack.c.h.b16 %v33
  %v76 = vunpack.c.l.b16 %v34
  %v77 = vunpack.c.h.b16 %v34
  %v78 = vunpack.c.l.b16 %v35
  %v79 = vunpack.c.h.b16 %v35
  %v80 = vunpack.c.l.b16 %v36
  %v81 = vunpack.c.h.b16 %v36
  %v82 = vunpack.c.l.b16 %v37
  %v83 = vunpack.c.h.b16 %v37
  %v84 = vunpack.c.l.b16 %v38
  %v85 = vunpack.c.h.b16 %v38
  %v86 = vunpack.c.l.b16 %v39
  %v87 = vunpack.c.h.b16 %v39
  %v88 = vpack.c.b16 %v58, %v56
  %v89 = vpack.c.b16 %v59, %v57
  %v90 = vpack.c.b16 %v62, %v60
  %v91 = vpack.c.b16 %v63, %v61
  %v92 = vpack.c.b16 %v66, %v64
  %v93 = vpack.c.b16 %v67, %v65
  %v94 = vpack.c.b16 %v70, %v68
  %v95 = vpack.c.b16 %v71, %v69
  %v96 = vpack.c.b16 %v74, %v72
  %v97 = vpack.c.b16 %v75, %v73
  %v98 = vpack.c.b16 %v78, %v76
  %v99 = vpack.c.b16 %v79, %v77
  %v100 = vpack.c.b16 %v82, %v80
  %v101 = vpack.c.b16 %v83, %v81
  %v102 = vpack.c.b16 %v86, %v84
  %v103 = vpack.c.b16 %v87, %v85
  %120 = vmatprep.subr.bf16.mxu0 %v89
  %121 = vmatpush1.bf16.msra.mxu0 %v88
  %122 = vmatprep.subr.bf16.mxu0 %v91
  %123 = vmatpush1.bf16.msra.mxu0 %v90
  %124 = vmatprep.subr.bf16.mxu0 %v93
  %125 = vmatpush1.bf16.msra.mxu0 %v92
  %126 = vmatprep.subr.bf16.mxu0 %v95
  %127 = vmatpush1.bf16.msra.mxu0 %v94
  %128 = vmatprep.subr.bf16.mxu0 %v97
  %129 = vmatpush1.bf16.msra.mxu0 %v96
  %130 = vmatprep.subr.bf16.mxu0 %v99
  %131 = vmatpush1.bf16.msra.mxu0 %v98
  %132 = vmatprep.subr.bf16.mxu0 %v101
  %133 = vmatpush1.bf16.msra.mxu0 %v100
  %134 = vmatprep.subr.bf16.mxu0 %v103
  %135 = vmatpush1.bf16.msra.mxu0 %v102
  %136 = vmatprep.subr.bf16.mxu0 0
  %137 = vmatpush1.bf16.msra.mxu0 0
  %138 = vmatprep.subr.bf16.mxu0 0
  %139 = vmatpush1.bf16.msra.mxu0 0
  %140 = vmatprep.subr.bf16.mxu0 0
  %141 = vmatpush1.bf16.msra.mxu0 0
  %142 = vmatprep.subr.bf16.mxu0 0
  %143 = vmatpush1.bf16.msra.mxu0 0
  %144 = vmatprep.subr.bf16.mxu0 0
  %145 = vmatpush1.bf16.msra.mxu0 0
  %146 = vmatprep.subr.bf16.mxu0 0
  %147 = vmatpush1.bf16.msra.mxu0 0
  %148 = vmatprep.subr.bf16.mxu0 0
  %149 = vmatpush1.bf16.msra.mxu0 0
  %150 = vmatprep.subr.bf16.mxu0 0
  %151 = vmatpush1.bf16.msra.mxu0 0
  %152 = vmatprep.mubr.bf16.mxu0 0
  %153 = vmatmul.mubr.bf16.gmra.mrb[0].mxu0 %v23
  %v154 = vpop.f32.mrb[0].mxu0
  %v155 = vadd.f32 0.0, %v154
  %v156 = vpop.f32.mrb[0].mxu0
  %v157 = vadd.f32 0.0, %v156
  %v158 = vpop.f32.mrb[0].mxu0
  %v159 = vpop.f32.mrb[0].mxu0
  %160 = vdwg.mxu0
  %v161 = vadd.f32 %v21, %v155
  %v162 = vadd.f32 %v22, %v157
  %163 = vst [vmem:[#allocation2] sm:$0xff] %v161
  %164 = vst [vmem:[#allocation2 + $0x8] sm:$0xff] %v162
  // Predicated region
  $region18: #{_lambda_.16} parent=0 // pred_check
    %p165 = pneg %p15
  $region19: #{_lambda_.16} parent=0 // pred_check_branch
    %167 = sbr.rel (%p165) target = $region21
  $region20: #{_lambda_.16} parent=0 // pred_region
    %v168 = vld [vmem:[#allocation2] sm:$0xff]
    %v169 = vld [vmem:[#allocation2 + $0x8] sm:$0xff]
    %v170 = vld [vmem:[%s2] sm:$0x3]
    %v172 = vlaneseq
    %v173 = vshrl.u32 %v172, 7
    %v174 = vsub.s32 0, %v173
    %v175 = vrot.slane %v170, %v174
    %v176 = vlaneseq
    %v177 = vshrl.u32 %v176, 7
    %v178 = vsub.s32 1, %v177
    %v179 = vrot.slane %v170, %v178
    %v182 = vadd.f32 %v168, %v175
    %v183 = vadd.f32 %v169, %v179
    %184 = vst [vmem:[%s3] sm:$0xff] %v182
    %185 = vst [vmem:[%s3 + $0x8] sm:$0xff] %v183
  $region21: #{_lambda_.16} parent=0 // pred_fallthru
    _
  // Predicated region
  $region22: #{_lambda_.16} parent=0 // pred_check
    _
  $region23: #{_lambda_.16} parent=0 // pred_check_branch
    %187 = sbr.rel (0) target = $region25
  $region24: #{_lambda_.16} parent=0 // pred_region
    _
  $region25: #{_lambda_.16} parent=0 // pred_fallthru
    _
  // Predicated region
  $region26: #{_lambda_.16} parent=0 // pred_check
    _
  $region27: #{_lambda_.16} parent=0 // pred_check_branch
    %189 = sbr.rel (0) target = $region29
  $region28: #{_lambda_.16} parent=0 // pred_region
    _
  $region29: #{_lambda_.16} parent=0 // pred_fallthru
    _

// kernel: _lambda_.19
$region0: #{_lambda_.19}
  #allocation0 [shape = 'u32[]', space=smem, size = 0x4, offset = 0x4, fixed_abs, tag = 'smem constant byte address 0x4 - core index']
  #allocation1 [shape = 'u32[144,128]{1,0:T(1,128)}', space=vmem, size = 0x12000, scoped, tag = 'internal scratch']
  #allocation2 [shape = 'f32[32,128]{1,0:T(8,128)}', space=vmem, size = 0x4000, scoped, tag = 'scratch operand']
  %s0 = inlined_call_operand.vmem [shape: bf16[32,128], index: 0, kind: input, shape index: {}]
  %s1 = inlined_call_operand.vmem [shape: bf16[128,128], index: 1, kind: input, shape index: {}]
  %s2 = inlined_call_operand.vmem [shape: f32[1,128], index: 2, kind: input, shape index: {}]
  %s3 = inlined_call_operand.vmem [shape: f32[32,128], index: 3, kind: output, shape index: {}]
  %s4 = sld [smem:[#allocation0]]
  $region30: #{_lambda_.19} parent=0
    _
  %s6 = ssub.s32 1, %s4
  %s7 = scalar_select 0, %s6, %s4
  // Predicated region
  $region2: #{_lambda_.19} parent=0 // pred_check
    _
  $region3: #{_lambda_.19} parent=0 // pred_check_branch
    %9 = sbr.rel (0) target = $region5
  $region4: #{_lambda_.19} parent=0 // pred_region
    _
  $region5: #{_lambda_.19} parent=0 // pred_fallthru
    _
  // Predicated region
  $region6: #{_lambda_.19} parent=0 // pred_check
    _
  $region7: #{_lambda_.19} parent=0 // pred_check_branch
    %11 = sbr.rel (0) target = $region9
  $region8: #{_lambda_.19} parent=0 // pred_region
    _
  $region9: #{_lambda_.19} parent=0 // pred_fallthru
    _
  // Predicated region
  $region10: #{_lambda_.19} parent=0 // pred_check
    _
  $region11: #{_lambda_.19} parent=0 // pred_check_branch
    %13 = sbr.rel (0) target = $region13
  $region12: #{_lambda_.19} parent=0 // pred_region
    _
  $region13: #{_lambda_.19} parent=0 // pred_fallthru
    _
  %p15 = scmp.eq.s32.totalorder 0, 0
  // Predicated region
  $region14: #{_lambda_.19} parent=0 // pred_check
    %p16 = pneg %p15
  $region15: #{_lambda_.19} parent=0 // pred_check_branch
    %18 = sbr.rel (%p16) target = $region17
  $region16: #{_lambda_.19} parent=0 // pred_region
    %19 = vst [vmem:[#allocation2] sm:$0xff] 0.0
    %20 = vst [vmem:[#allocation2 + $0x8] sm:$0xff] 0.0
    %21 = vst [vmem:[#allocation2 + $0x10] sm:$0xff] 0.0
    %22 = vst [vmem:[#allocation2 + $0x18] sm:$0xff] 0.0
  $region17: #{_lambda_.19} parent=0 // pred_fallthru
    _
  %v23 = vld [vmem:[#allocation2] sm:$0xff]
  %v24 = vld [vmem:[#allocation2 + $0x8] sm:$0xff]
  %v25 = vld [vmem:[#allocation2 + $0x10] sm:$0xff]
  %v26 = vld [vmem:[#allocation2 + $0x18] sm:$0xff]
  %v27 = vld [vmem:[%s0] sm:$0xf]
  %v28 = vld [vmem:[%s0 + $0x4] sm:$0xf]
  %v29 = vld [vmem:[%s0 + $0x8] sm:$0xf]
  %v30 = vld [vmem:[%s0 + $0xc] sm:$0xf]
  %v31 = vld [vmem:[%s1] sm:$0xf]
  %v32 = vld [vmem:[%s1 + $0x4] sm:$0xf]
  %v33 = vld [vmem:[%s1 + $0x8] sm:$0xf]
  %v34 = vld [vmem:[%s1 + $0xc] sm:$0xf]
  %v35 = vld [vmem:[%s1 + $0x10] sm:$0xf]
  %v36 = vld [vmem:[%s1 + $0x14] sm:$0xf]
  %v37 = vld [vmem:[%s1 + $0x18] sm:$0xf]
  %v38 = vld [vmem:[%s1 + $0x1c] sm:$0xf]
  %v39 = vld [vmem:[%s1 + $0x20] sm:$0xf]
  %v40 = vld [vmem:[%s1 + $0x24] sm:$0xf]
  %v41 = vld [vmem:[%s1 + $0x28] sm:$0xf]
  %v42 = vld [vmem:[%s1 + $0x2c] sm:$0xf]
  %v43 = vld [vmem:[%s1 + $0x30] sm:$0xf]
  %v44 = vld [vmem:[%s1 + $0x34] sm:$0xf]
  %v45 = vld [vmem:[%s1 + $0x38] sm:$0xf]
  %v46 = vld [vmem:[%s1 + $0x3c] sm:$0xf]
  %v51 = vunpack.c.l.b16 %v27
  %v52 = vunpack.c.l.b16 %v28
  %v53 = vunpack.c.l.b16 %v29
  %v54 = vunpack.c.l.b16 %v30
  %v55 = vpack.c.b16 %v52, %v51
  %v56 = vpack.c.b16 %v54, %v53
  %v75 = vunpack.c.l.b16 %v31
  %v76 = vunpack.c.l.b16 %v32
  %v77 = vunpack.c.l.b16 %v33
  %v78 = vunpack.c.l.b16 %v34
  %v79 = vunpack.c.l.b16 %v35
  %v80 = vunpack.c.l.b16 %v36
  %v81 = vunpack.c.l.b16 %v37
  %v82 = vunpack.c.l.b16 %v38
  %v83 = vunpack.c.l.b16 %v39
  %v84 = vunpack.c.l.b16 %v40
  %v85 = vunpack.c.l.b16 %v41
  %v86 = vunpack.c.l.b16 %v42
  %v87 = vunpack.c.l.b16 %v43
  %v88 = vunpack.c.l.b16 %v44
  %v89 = vunpack.c.l.b16 %v45
  %v90 = vunpack.c.l.b16 %v46
  %v91 = vpack.c.b16 %v76, %v75
  %v92 = vpack.c.b16 %v78, %v77
  %v93 = vpack.c.b16 %v80, %v79
  %v94 = vpack.c.b16 %v82, %v81
  %v95 = vpack.c.b16 %v84, %v83
  %v96 = vpack.c.b16 %v86, %v85
  %v97 = vpack.c.b16 %v88, %v87
  %v98 = vpack.c.b16 %v90, %v89
  %107 = vmatprep.subr.bf16.mxu0 0
  %108 = vmatpush1.bf16.msra.mxu0 %v91
  %109 = vmatprep.subr.bf16.mxu0 0
  %110 = vmatpush1.bf16.msra.mxu0 %v92
  %111 = vmatprep.subr.bf16.mxu0 0
  %112 = vmatpush1.bf16.msra.mxu0 %v93
  %113 = vmatprep.subr.bf16.mxu0 0
  %114 = vmatpush1.bf16.msra.mxu0 %v94
  %115 = vmatprep.subr.bf16.mxu0 0
  %116 = vmatpush1.bf16.msra.mxu0 %v95
  %117 = vmatprep.subr.bf16.mxu0 0
  %118 = vmatpush1.bf16.msra.mxu0 %v96
  %119 = vmatprep.subr.bf16.mxu0 0
  %120 = vmatpush1.bf16.msra.mxu0 %v97
  %121 = vmatprep.subr.bf16.mxu0 0
  %122 = vmatpush1.bf16.msra.mxu0 %v98
  %123 = vmatprep.subr.bf16.mxu0 0
  %124 = vmatpush1.bf16.msra.mxu0 0
  %125 = vmatprep.subr.bf16.mxu0 0
  %126 = vmatpush1.bf16.msra.mxu0 0
  %127 = vmatprep.subr.bf16.mxu0 0
  %128 = vmatpush1.bf16.msra.mxu0 0
  %129 = vmatprep.subr.bf16.mxu0 0
  %130 = vmatpush1.bf16.msra.mxu0 0
  %131 = vmatprep.subr.bf16.mxu0 0
  %132 = vmatpush1.bf16.msra.mxu0 0
  %133 = vmatprep.subr.bf16.mxu0 0
  %134 = vmatpush1.bf16.msra.mxu0 0
  %135 = vmatprep.subr.bf16.mxu0 0
  %136 = vmatpush1.bf16.msra.mxu0 0
  %137 = vmatprep.subr.bf16.mxu0 0
  %138 = vmatpush1.bf16.msra.mxu0 0
  %139 = vmatprep.mubr.bf16.mxu0 0
  %140 = vmatmul.mubr.bf16.gmra.mrb[0].mxu0 %v55
  %v141 = vpop.f32.mrb[0].mxu0
  %v142 = vadd.f32 0.0, %v141
  %v143 = vpop.f32.mrb[0].mxu0
  %v144 = vpop.f32.mrb[0].mxu0
  %v145 = vadd.f32 0.0, %v144
  %v146 = vpop.f32.mrb[0].mxu0
  %147 = vmatprep.mubr.bf16.mxu0 0
  %148 = vmatmul.mubr.bf16.gmra.mrb[0].mxu0 %v56
  %v149 = vpop.f32.mrb[0].mxu0
  %v150 = vadd.f32 0.0, %v149
  %v151 = vpop.f32.mrb[0].mxu0
  %v152 = vpop.f32.mrb[0].mxu0
  %v153 = vadd.f32 0.0, %v152
  %v154 = vpop.f32.mrb[0].mxu0
  %155 = vdwg.mxu0
  %v156 = vadd.f32 %v23, %v142
  %v157 = vadd.f32 %v24, %v145
  %v158 = vadd.f32 %v25, %v150
  %v159 = vadd.f32 %v26, %v153
  %160 = vst [vmem:[#allocation2] sm:$0xff] %v156
  %161 = vst [vmem:[#allocation2 + $0x8] sm:$0xff] %v157
  %162 = vst [vmem:[#allocation2 + $0x10] sm:$0xff] %v158
  %163 = vst [vmem:[#allocation2 + $0x18] sm:$0xff] %v159
  // Predicated region
  $region18: #{_lambda_.19} parent=0 // pred_check
    %p164 = pneg %p15
  $region19: #{_lambda_.19} parent=0 // pred_check_branch
    %166 = sbr.rel (%p164) target = $region21
  $region20: #{_lambda_.19} parent=0 // pred_region
    %v167 = vld [vmem:[#allocation2] sm:$0xff]
    %v168 = vld [vmem:[#allocation2 + $0x8] sm:$0xff]
    %v169 = vld [vmem:[#allocation2 + $0x10] sm:$0xff]
    %v170 = vld [vmem:[#allocation2 + $0x18] sm:$0xff]
    %v171 = vld [vmem:[%s2] sm:$0x1]
    %v173 = vlaneseq
    %v174 = vshrl.u32 %v173, 7
    %v175 = vsub.s32 0, %v174
    %v176 = vrot.slane %v171, %v175
    %v178 = vadd.f32 %v167, %v176
    %v179 = vadd.f32 %v168, %v176
    %v180 = vadd.f32 %v169, %v176
    %v181 = vadd.f32 %v170, %v176
    %182 = vst [vmem:[%s3] sm:$0xff] %v178
    %183 = vst [vmem:[%s3 + $0x8] sm:$0xff] %v179
    %184 = vst [vmem:[%s3 + $0x10] sm:$0xff] %v180
    %185 = vst [vmem:[%s3 + $0x18] sm:$0xff] %v181
  $region21: #{_lambda_.19} parent=0 // pred_fallthru
    _
  // Predicated region
  $region22: #{_lambda_.19} parent=0 // pred_check
    _
  $region23: #{_lambda_.19} parent=0 // pred_check_branch
    %187 = sbr.rel (0) target = $region25
  $region24: #{_lambda_.19} parent=0 // pred_region
    _
  $region25: #{_lambda_.19} parent=0 // pred_fallthru
    _
  // Predicated region
  $region26: #{_lambda_.19} parent=0 // pred_check
    _
  $region27: #{_lambda_.19} parent=0 // pred_check_branch
    %189 = sbr.rel (0) target = $region29
  $region28: #{_lambda_.19} parent=0 // pred_region
    _
  $region29: #{_lambda_.19} parent=0 // pred_fallthru
    _

// kernel: _lambda_.23
$region0: #{_lambda_.23}
  #allocation0 [shape = 'u32[]', space=smem, size = 0x4, offset = 0x4, fixed_abs, tag = 'smem constant byte address 0x4 - core index']
  #allocation1 [shape = 'u32[144,128]{1,0:T(1,128)}', space=vmem, size = 0x12000, scoped, tag = 'internal scratch']
  %s0 = inlined_call_operand.vmem [shape: f32[128,128], index: 0, kind: input, shape index: {}]
  %s1 = inlined_call_operand.vmem [shape: f32[1,128], index: 1, kind: output, shape index: {0}]
  %s2 = inlined_call_operand.vmem [shape: f32[1,128], index: 2, kind: output, shape index: {1}]
  %3 = xla_tuple %s1, %s2
  %s4 = sld [smem:[#allocation0]]
  $region26: #{_lambda_.23} parent=0
    _
  %s6 = ssub.s32 1, %s4
  %s7 = scalar_select 0, %s6, %s4
  // Predicated region
  $region2: #{_lambda_.23} parent=0 // pred_check
    _
  $region3: #{_lambda_.23} parent=0 // pred_check_branch
    %9 = sbr.rel (0) target = $region5
  $region4: #{_lambda_.23} parent=0 // pred_region
    _
  $region5: #{_lambda_.23} parent=0 // pred_fallthru
    _
  %p10 = scmp.eq.s32.totalorder 0, 0
  // Predicated region
  $region6: #{_lambda_.23} parent=0 // pred_check
    %p11 = pneg %p10
  $region7: #{_lambda_.23} parent=0 // pred_check_branch
    %13 = sbr.rel (%p11) target = $region9
  $region8: #{_lambda_.23} parent=0 // pred_region
    %14 = vst [vmem:[%s1] sm:$0x1] 0.0
    %15 = vst [vmem:[%s2] sm:$0x1] 0.0
  $region9: #{_lambda_.23} parent=0 // pred_fallthru
    _
  %v16 = vld [vmem:[%s0] sm:$0xff]
  %v17 = vld [vmem:[%s0 + $0x8] sm:$0xff]
  %v18 = vld [vmem:[%s0 + $0x10] sm:$0xff]
  %v19 = vld [vmem:[%s0 + $0x18] sm:$0xff]
  %v20 = vld [vmem:[%s0 + $0x20] sm:$0xff]
  %v21 = vld [vmem:[%s0 + $0x28] sm:$0xff]
  %v22 = vld [vmem:[%s0 + $0x30] sm:$0xff]
  %v23 = vld [vmem:[%s0 + $0x38] sm:$0xff]
  %v24 = vld [vmem:[%s0 + $0x40] sm:$0xff]
  %v25 = vld [vmem:[%s0 + $0x48] sm:$0xff]
  %v26 = vld [vmem:[%s0 + $0x50] sm:$0xff]
  %v27 = vld [vmem:[%s0 + $0x58] sm:$0xff]
  %v28 = vld [vmem:[%s0 + $0x60] sm:$0xff]
  %v29 = vld [vmem:[%s0 + $0x68] sm:$0xff]
  %v30 = vld [vmem:[%s0 + $0x70] sm:$0xff]
  %v31 = vld [vmem:[%s0 + $0x78] sm:$0xff]
  %v32 = vld [vmem:[%s1] sm:$0x1]
  %v33 = vadd.f32 %v16, %v17
  %v34 = vadd.f32 %v33, %v18
  %v35 = vadd.f32 %v34, %v19
  %v36 = vadd.f32 %v35, %v20
  %v37 = vadd.f32 %v36, %v21
  %v38 = vadd.f32 %v37, %v22
  %v39 = vadd.f32 %v38, %v23
  %v40 = vadd.f32 %v39, %v24
  %v41 = vadd.f32 %v40, %v25
  %v42 = vadd.f32 %v41, %v26
  %v43 = vadd.f32 %v42, %v27
  %v44 = vadd.f32 %v43, %v28
  %v45 = vadd.f32 %v44, %v29
  %v46 = vadd.f32 %v45, %v30
  %v47 = vadd.f32 %v46, %v31
  %v48 = vrot.slane %v47, 4
  %v49 = vadd.f32 %v47, %v48
  %v50 = vrot.slane %v49, 2
  %v51 = vadd.f32 %v49, %v50
  %v52 = vrot.slane %v51, 1
  %v53 = vadd.f32 %v51, %v52
  %v54 = vadd.f32 %v32, %v53
  %55 = vst [vmem:[%s1] sm:$0x1] %v54
  %v56 = vld [vmem:[%s2] sm:$0x1]
  %v57 = vmul.f32 %v16, %v16
  %v58 = vmul.f32 %v17, %v17
  %v59 = vmul.f32 %v18, %v18
  %v60 = vmul.f32 %v19, %v19
  %v61 = vmul.f32 %v20, %v20
  %v62 = vmul.f32 %v21, %v21
  %v63 = vmul.f32 %v22, %v22
  %v64 = vmul.f32 %v23, %v23
  %v65 = vmul.f32 %v24, %v24
  %v66 = vmul.f32 %v25, %v25
  %v67 = vmul.f32 %v26, %v26
  %v68 = vmul.f32 %v27, %v27
  %v69 = vmul.f32 %v28, %v28
  %v70 = vmul.f32 %v29, %v29
  %v71 = vmul.f32 %v30, %v30
  %v72 = vmul.f32 %v31, %v31
  %v73 = vadd.f32 %v57, %v58
  %v74 = vadd.f32 %v73, %v59
  %v75 = vadd.f32 %v74, %v60
  %v76 = vadd.f32 %v75, %v61
  %v77 = vadd.f32 %v76, %v62
  %v78 = vadd.f32 %v77, %v63
  %v79 = vadd.f32 %v78, %v64
  %v80 = vadd.f32 %v79, %v65
  %v81 = vadd.f32 %v80, %v66
  %v82 = vadd.f32 %v81, %v67
  %v83 = vadd.f32 %v82, %v68
  %v84 = vadd.f32 %v83, %v69
  %v85 = vadd.f32 %v84, %v70
  %v86 = vadd.f32 %v85, %v71
  %v87 = vadd.f32 %v86, %v72
  %v88 = vrot.slane %v87, 4
  %v89 = vadd.f32 %v87, %v88
  %v90 = vrot.slane %v89, 2
  %v91 = vadd.f32 %v89, %v90
  %v92 = vrot.slane %v91, 1
  %v93 = vadd.f32 %v91, %v92
  %v94 = vadd.f32 %v56, %v93
  %95 = vst [vmem:[%s2] sm:$0x1] %v94
  // Predicated region
  $region10: #{_lambda_.23} parent=0 // pred_check
    _
  $region11: #{_lambda_.23} parent=0 // pred_check_branch
    %97 = sbr.rel (0) target = $region13
  $region12: #{_lambda_.23} parent=0 // pred_region
    _
  $region13: #{_lambda_.23} parent=0 // pred_fallthru
    _
  // Predicated region
  $region14: #{_lambda_.23} parent=0 // pred_check
    _
  $region15: #{_lambda_.23} parent=0 // pred_check_branch
    %99 = sbr.rel (0) target = $region17
  $region16: #{_lambda_.23} parent=0 // pred_region
    _
  $region17: #{_lambda_.23} parent=0 // pred_fallthru
    _
  // Predicated region
  $region18: #{_lambda_.23} parent=0 // pred_check
    _
  $region19: #{_lambda_.23} parent=0 // pred_check_branch
    %101 = sbr.rel (0) target = $region21
  $region20: #{_lambda_.23} parent=0 // pred_region
    _
  $region21: #{_lambda_.23} parent=0 // pred_fallthru
    _
  // Predicated region
  $region22: #{_lambda_.23} parent=0 // pred_check
    _
  $region23: #{_lambda_.23} parent=0 // pred_check_branch
    %103 = sbr.rel (0) target = $region25
  $region24: #{_lambda_.23} parent=0 // pred_region
    _
  $region25: #{_lambda_.23} parent=0 // pred_fallthru
    _

// kernel: _lambda_.25
$region0: #{_lambda_.25}
  #allocation0 [shape = 'u32[]', space=smem, size = 0x4, offset = 0x4, fixed_abs, tag = 'smem constant byte address 0x4 - core index']
  #allocation1 [shape = 'u32[144,128]{1,0:T(1,128)}', space=vmem, size = 0x12000, scoped, tag = 'internal scratch']
  #allocation2 [shape = 'f32[128,128]{1,0:T(8,128)}', space=vmem, size = 0x10000, scoped, tag = 'scratch operand']
  %s0 = inlined_call_operand.vmem [shape: bf16[128,128], index: 0, kind: input, shape index: {}]
  %s1 = inlined_call_operand.vmem [shape: bf16[128,128], index: 1, kind: input, shape index: {}]
  %s2 = inlined_call_operand.vmem [shape: f32[1,128], index: 2, kind: input, shape index: {}]
  %s3 = inlined_call_operand.vmem [shape: f32[128,128], index: 3, kind: output, shape index: {}]
  %s4 = sld [smem:[#allocation0]]
  $region30: #{_lambda_.25} parent=0
    _
  %s6 = ssub.s32 1, %s4
  %s7 = scalar_select 0, %s6, %s4
  // Predicated region
  $region2: #{_lambda_.25} parent=0 // pred_check
    _
  $region3: #{_lambda_.25} parent=0 // pred_check_branch
    %9 = sbr.rel (0) target = $region5
  $region4: #{_lambda_.25} parent=0 // pred_region
    _
  $region5: #{_lambda_.25} parent=0 // pred_fallthru
    _
  // Predicated region
  $region6: #{_lambda_.25} parent=0 // pred_check
    _
  $region7: #{_lambda_.25} parent=0 // pred_check_branch
    %11 = sbr.rel (0) target = $region9
  $region8: #{_lambda_.25} parent=0 // pred_region
    _
  $region9: #{_lambda_.25} parent=0 // pred_fallthru
    _
  // Predicated region
  $region10: #{_lambda_.25} parent=0 // pred_check
    _
  $region11: #{_lambda_.25} parent=0 // pred_check_branch
    %13 = sbr.rel (0) target = $region13
  $region12: #{_lambda_.25} parent=0 // pred_region
    _
  $region13: #{_lambda_.25} parent=0 // pred_fallthru
    _
  %p15 = scmp.eq.s32.totalorder 0, 0
  // Predicated region
  $region14: #{_lambda_.25} parent=0 // pred_check
    %p16 = pneg %p15
  $region15: #{_lambda_.25} parent=0 // pred_check_branch
    %18 = sbr.rel (%p16) target = $region17
  $region16: #{_lambda_.25} parent=0 // pred_region
    %19 = vst [vmem:[#allocation2] sm:$0xff] 0.0
    %20 = vst [vmem:[#allocation2 + $0x8] sm:$0xff] 0.0
    %21 = vst [vmem:[#allocation2 + $0x10] sm:$0xff] 0.0
    %22 = vst [vmem:[#allocation2 + $0x18] sm:$0xff] 0.0
    %23 = vst [vmem:[#allocation2 + $0x20] sm:$0xff] 0.0
    %24 = vst [vmem:[#allocation2 + $0x28] sm:$0xff] 0.0
    %25 = vst [vmem:[#allocation2 + $0x30] sm:$0xff] 0.0
    %26 = vst [vmem:[#allocation2 + $0x38] sm:$0xff] 0.0
    %27 = vst [vmem:[#allocation2 + $0x40] sm:$0xff] 0.0
    %28 = vst [vmem:[#allocation2 + $0x48] sm:$0xff] 0.0
    %29 = vst [vmem:[#allocation2 + $0x50] sm:$0xff] 0.0
    %30 = vst [vmem:[#allocation2 + $0x58] sm:$0xff] 0.0
    %31 = vst [vmem:[#allocation2 + $0x60] sm:$0xff] 0.0
    %32 = vst [vmem:[#allocation2 + $0x68] sm:$0xff] 0.0
    %33 = vst [vmem:[#allocation2 + $0x70] sm:$0xff] 0.0
    %34 = vst [vmem:[#allocation2 + $0x78] sm:$0xff] 0.0
  $region17: #{_lambda_.25} parent=0 // pred_fallthru
    _
  %v35 = vld [vmem:[#allocation2] sm:$0xff]
  %v36 = vld [vmem:[#allocation2 + $0x8] sm:$0xff]
  %v37 = vld [vmem:[#allocation2 + $0x10] sm:$0xff]
  %v38 = vld [vmem:[#allocation2 + $0x18] sm:$0xff]
  %v39 = vld [vmem:[#allocation2 + $0x20] sm:$0xff]
  %v40 = vld [vmem:[#allocation2 + $0x28] sm:$0xff]
  %v41 = vld [vmem:[#allocation2 + $0x30] sm:$0xff]
  %v42 = vld [vmem:[#allocation2 + $0x38] sm:$0xff]
  %v43 = vld [vmem:[#allocation2 + $0x40] sm:$0xff]
  %v44 = vld [vmem:[#allocation2 + $0x48] sm:$0xff]
  %v45 = vld [vmem:[#allocation2 + $0x50] sm:$0xff]
  %v46 = vld [vmem:[#allocation2 + $0x58] sm:$0xff]
  %v47 = vld [vmem:[#allocation2 + $0x60] sm:$0xff]
  %v48 = vld [vmem:[#allocation2 + $0x68] sm:$0xff]
  %v49 = vld [vmem:[#allocation2 + $0x70] sm:$0xff]
  %v50 = vld [vmem:[#allocation2 + $0x78] sm:$0xff]
  %v51 = vld [vmem:[%s0] sm:$0xf]
  %v52 = vld [vmem:[%s0 + $0x4] sm:$0xf]
  %v53 = vld [vmem:[%s0 + $0x8] sm:$0xf]
  %v54 = vld [vmem:[%s0 + $0xc] sm:$0xf]
  %v55 = vld [vmem:[%s0 + $0x10] sm:$0xf]
  %v56 = vld [vmem:[%s0 + $0x14] sm:$0xf]
  %v57 = vld [vmem:[%s0 + $0x18] sm:$0xf]
  %v58 = vld [vmem:[%s0 + $0x1c] sm:$0xf]
  %v59 = vld [vmem:[%s0 + $0x20] sm:$0xf]
  %v60 = vld [vmem:[%s0 + $0x24] sm:$0xf]
  %v61 = vld [vmem:[%s0 + $0x28] sm:$0xf]
  %v62 = vld [vmem:[%s0 + $0x2c] sm:$0xf]
  %v63 = vld [vmem:[%s0 + $0x30] sm:$0xf]
  %v64 = vld [vmem:[%s0 + $0x34] sm:$0xf]
  %v65 = vld [vmem:[%s0 + $0x38] sm:$0xf]
  %v66 = vld [vmem:[%s0 + $0x3c] sm:$0xf]
  %v67 = vld [vmem:[%s1] sm:$0xf]
  %v68 = vld [vmem:[%s1 + $0x4] sm:$0xf]
  %v69 = vld [vmem:[%s1 + $0x8] sm:$0xf]
  %v70 = vld [vmem:[%s1 + $0xc] sm:$0xf]
  %v71 = vld [vmem:[%s1 + $0x10] sm:$0xf]
  %v72 = vld [vmem:[%s1 + $0x14] sm:$0xf]
  %v73 = vld [vmem:[%s1 + $0x18] sm:$0xf]
  %v74 = vld [vmem:[%s1 + $0x1c] sm:$0xf]
  %v75 = vld [vmem:[%s1 + $0x20] sm:$0xf]
  %v76 = vld [vmem:[%s1 + $0x24] sm:$0xf]
  %v77 = vld [vmem:[%s1 + $0x28] sm:$0xf]
  %v78 = vld [vmem:[%s1 + $0x2c] sm:$0xf]
  %v79 = vld [vmem:[%s1 + $0x30] sm:$0xf]
  %v80 = vld [vmem:[%s1 + $0x34] sm:$0xf]
  %v81 = vld [vmem:[%s1 + $0x38] sm:$0xf]
  %v82 = vld [vmem:[%s1 + $0x3c] sm:$0xf]
  %v99 = vunpack.c.l.b16 %v51
  %v100 = vunpack.c.l.b16 %v52
  %v101 = vunpack.c.l.b16 %v53
  %v102 = vunpack.c.l.b16 %v54
  %v103 = vunpack.c.l.b16 %v55
  %v104 = vunpack.c.l.b16 %v56
  %v105 = vunpack.c.l.b16 %v57
  %v106 = vunpack.c.l.b16 %v58
  %v107 = vunpack.c.l.b16 %v59
  %v108 = vunpack.c.l.b16 %v60
  %v109 = vunpack.c.l.b16 %v61
  %v110 = vunpack.c.l.b16 %v62
  %v111 = vunpack.c.l.b16 %v63
  %v112 = vunpack.c.l.b16 %v64
  %v113 = vunpack.c.l.b16 %v65
  %v114 = vunpack.c.l.b16 %v66
  %v115 = vpack.c.b16 %v100, %v99
  %v116 = vpack.c.b16 %v102, %v101
  %v117 = vpack.c.b16 %v104, %v103
  %v118 = vpack.c.b16 %v106, %v105
  %v119 = vpack.c.b16 %v108, %v107
  %v120 = vpack.c.b16 %v110, %v109
  %v121 = vpack.c.b16 %v112, %v111
  %v122 = vpack.c.b16 %v114, %v113
  %v147 = vunpack.c.l.b16 %v67
  %v148 = vunpack.c.l.b16 %v68
  %v149 = vunpack.c.l.b16 %v69
  %v150 = vunpack.c.l.b16 %v70
  %v151 = vunpack.c.l.b16 %v71
  %v152 = vunpack.c.l.b16 %v72
  %v153 = vunpack.c.l.b16 %v73
  %v154 = vunpack.c.l.b16 %v74
  %v155 = vunpack.c.l.b16 %v75
  %v156 = vunpack.c.l.b16 %v76
  %v157 = vunpack.c.l.b16 %v77
  %v158 = vunpack.c.l.b16 %v78
  %v159 = vunpack.c.l.b16 %v79
  %v160 = vunpack.c.l.b16 %v80
  %v161 = vunpack.c.l.b16 %v81
  %v162 = vunpack.c.l.b16 %v82
  %v163 = vpack.c.b16 %v148, %v147
  %v164 = vpack.c.b16 %v150, %v149
  %v165 = vpack.c.b16 %v152, %v151
  %v166 = vpack.c.b16 %v154, %v153
  %v167 = vpack.c.b16 %v156, %v155
  %v168 = vpack.c.b16 %v158, %v157
  %v169 = vpack.c.b16 %v160, %v159
  %v170 = vpack.c.b16 %v162, %v161
  %179 = vmatprep.subr.bf16.mxu0 0
  %180 = vmatpush1.bf16.msra.mxu0 %v163
  %181 = vmatprep.subr.bf16.mxu0 0
  %182 = vmatpush1.bf16.msra.mxu0 %v164
  %183 = vmatprep.subr.bf16.mxu0 0
  %184 = vmatpush1.bf16.msra.mxu0 %v165
  %185 = vmatprep.subr.bf16.mxu0 0
  %186 = vmatpush1.bf16.msra.mxu0 %v166
  %187 = vmatprep.subr.bf16.mxu0 0
  %188 = vmatpush1.bf16.msra.mxu0 %v167
  %189 = vmatprep.subr.bf16.mxu0 0
  %190 = vmatpush1.bf16.msra.mxu0 %v168
  %191 = vmatprep.subr.bf16.mxu0 0
  %192 = vmatpush1.bf16.msra.mxu0 %v169
  %193 = vmatprep.subr.bf16.mxu0 0
  %194 = vmatpush1.bf16.msra.mxu0 %v170
  %195 = vmatprep.subr.bf16.mxu0 0
  %196 = vmatpush1.bf16.msra.mxu0 0
  %197 = vmatprep.subr.bf16.mxu0 0
  %198 = vmatpush1.bf16.msra.mxu0 0
  %199 = vmatprep.subr.bf16.mxu0 0
  %200 = vmatpush1.bf16.msra.mxu0 0
  %201 = vmatprep.subr.bf16.mxu0 0
  %202 = vmatpush1.bf16.msra.mxu0 0
  %203 = vmatprep.subr.bf16.mxu0 0
  %204 = vmatpush1.bf16.msra.mxu0 0
  %205 = vmatprep.subr.bf16.mxu0 0
  %206 = vmatpush1.bf16.msra.mxu0 0
  %207 = vmatprep.subr.bf16.mxu0 0
  %208 = vmatpush1.bf16.msra.mxu0 0
  %209 = vmatprep.subr.bf16.mxu0 0
  %210 = vmatpush1.bf16.msra.mxu0 0
  %211 = vmatprep.mubr.bf16.mxu0 0
  %212 = vmatmul.mubr.bf16.gmra.mrb[0].mxu0 %v115
  %v213 = vpop.f32.mrb[0].mxu0
  %v214 = vadd.f32 0.0, %v213
  %v215 = vpop.f32.mrb[0].mxu0
  %v216 = vpop.f32.mrb[0].mxu0
  %v217 = vadd.f32 0.0, %v216
  %v218 = vpop.f32.mrb[0].mxu0
  %219 = vmatprep.mubr.bf16.mxu0 0
  %220 = vmatmul.mubr.bf16.gmra.mrb[0].mxu0 %v116
  %v221 = vpop.f32.mrb[0].mxu0
  %v222 = vadd.f32 0.0, %v221
  %v223 = vpop.f32.mrb[0].mxu0
  %v224 = vpop.f32.mrb[0].mxu0
  %v225 = vadd.f32 0.0, %v224
  %v226 = vpop.f32.mrb[0].mxu0
  %227 = vmatprep.mubr.bf16.mxu0 0
  %228 = vmatmul.mubr.bf16.gmra.mrb[0].mxu0 %v117
  %v229 = vpop.f32.mrb[0].mxu0
  %v230 = vadd.f32 0.0, %v229
  %v231 = vpop.f32.mrb[0].mxu0
  %v232 = vpop.f32.mrb[0].mxu0
  %v233 = vadd.f32 0.0, %v232
  %v234 = vpop.f32.mrb[0].mxu0
  %235 = vmatprep.mubr.bf16.mxu0 0
  %236 = vmatmul.mubr.bf16.gmra.mrb[0].mxu0 %v118
  %v237 = vpop.f32.mrb[0].mxu0
  %v238 = vadd.f32 0.0, %v237
  %v239 = vpop.f32.mrb[0].mxu0
  %v240 = vpop.f32.mrb[0].mxu0
  %v241 = vadd.f32 0.0, %v240
  %v242 = vpop.f32.mrb[0].mxu0
  %243 = vmatprep.mubr.bf16.mxu0 0
  %244 = vmatmul.mubr.bf16.gmra.mrb[0].mxu0 %v119
  %v245 = vpop.f32.mrb[0].mxu0
  %v246 = vadd.f32 0.0, %v245
  %v247 = vpop.f32.mrb[0].mxu0
  %v248 = vpop.f32.mrb[0].mxu0
  %v249 = vadd.f32 0.0, %v248
  %v250 = vpop.f32.mrb[0].mxu0
  %251 = vmatprep.mubr.bf16.mxu0 0
  %252 = vmatmul.mubr.bf16.gmra.mrb[0].mxu0 %v120
  %v253 = vpop.f32.mrb[0].mxu0
  %v254 = vadd.f32 0.0, %v253
  %v255 = vpop.f32.mrb[0].mxu0
  %v256 = vpop.f32.mrb[0].mxu0
  %v257 = vadd.f32 0.0, %v256
  %v258 = vpop.f32.mrb[0].mxu0
  %259 = vmatprep.mubr.bf16.mxu0 0
  %260 = vmatmul.mubr.bf16.gmra.mrb[0].mxu0 %v121
  %v261 = vpop.f32.mrb[0].mxu0
  %v262 = vadd.f32 0.0, %v261
  %v263 = vpop.f32.mrb[0].mxu0
  %v264 = vpop.f32.mrb[0].mxu0
  %v265 = vadd.f32 0.0, %v264
  %v266 = vpop.f32.mrb[0].mxu0
  %267 = vmatprep.mubr.bf16.mxu0 0
  %268 = vmatmul.mubr.bf16.gmra.mrb[0].mxu0 %v122
  %v269 = vpop.f32.mrb[0].mxu0
  %v270 = vadd.f32 0.0, %v269
  %v271 = vpop.f32.mrb[0].mxu0
  %v272 = vpop.f32.mrb[0].mxu0
  %v273 = vadd.f32 0.0, %v272
  %v274 = vpop.f32.mrb[0].mxu0
  %275 = vdwg.mxu0
  %v276 = vadd.f32 %v35, %v214
  %v277 = vadd.f32 %v36, %v217
  %v278 = vadd.f32 %v37, %v222
  %v279 = vadd.f32 %v38, %v225
  %v280 = vadd.f32 %v39, %v230
  %v281 = vadd.f32 %v40, %v233
  %v282 = vadd.f32 %v41, %v238
  %v283 = vadd.f32 %v42, %v241
  %v284 = vadd.f32 %v43, %v246
  %v285 = vadd.f32 %v44, %v249
  %v286 = vadd.f32 %v45, %v254
  %v287 = vadd.f32 %v46, %v257
  %v288 = vadd.f32 %v47, %v262
  %v289 = vadd.f32 %v48, %v265
  %v290 = vadd.f32 %v49, %v270
  %v291 = vadd.f32 %v50, %v273
  %292 = vst [vmem:[#allocation2] sm:$0xff] %v276
  %293 = vst [vmem:[#allocation2 + $0x8] sm:$0xff] %v277
  %294 = vst [vmem:[#allocation2 + $0x10] sm:$0xff] %v278
  %295 = vst [vmem:[#allocation2 + $0x18] sm:$0xff] %v279
  %296 = vst [vmem:[#allocation2 + $0x20] sm:$0xff] %v280
  %297 = vst [vmem:[#allocation2 + $0x28] sm:$0xff] %v281
  %298 = vst [vmem:[#allocation2 + $0x30] sm:$0xff] %v282
  %299 = vst [vmem:[#allocation2 + $0x38] sm:$0xff] %v283
  %300 = vst [vmem:[#allocation2 + $0x40] sm:$0xff] %v284
  %301 = vst [vmem:[#allocation2 + $0x48] sm:$0xff] %v285
  %302 = vst [vmem:[#allocation2 + $0x50] sm:$0xff] %v286
  %303 = vst [vmem:[#allocation2 + $0x58] sm:$0xff] %v287
  %304 = vst [vmem:[#allocation2 + $0x60] sm:$0xff] %v288
  %305 = vst [vmem:[#allocation2 + $0x68] sm:$0xff] %v289
  %306 = vst [vmem:[#allocation2 + $0x70] sm:$0xff] %v290
  %307 = vst [vmem:[#allocation2 + $0x78] sm:$0xff] %v291
  // Predicated region
  $region18: #{_lambda_.25} parent=0 // pred_check
    %p308 = pneg %p15
  $region19: #{_lambda_.25} parent=0 // pred_check_branch
    %310 = sbr.rel (%p308) target = $region21
  $region20: #{_lambda_.25} parent=0 // pred_region
    %v311 = vld [vmem:[#allocation2] sm:$0xff]
    %v312 = vld [vmem:[#allocation2 + $0x8] sm:$0xff]
    %v313 = vld [vmem:[#allocation2 + $0x10] sm:$0xff]
    %v314 = vld [vmem:[#allocation2 + $0x18] sm:$0xff]
    %v315 = vld [vmem:[#allocation2 + $0x20] sm:$0xff]
    %v316 = vld [vmem:[#allocation2 + $0x28] sm:$0xff]
    %v317 = vld [vmem:[#allocation2 + $0x30] sm:$0xff]
    %v318 = vld [vmem:[#allocation2 + $0x38] sm:$0xff]
    %v319 = vld [vmem:[#allocation2 + $0x40] sm:$0xff]
    %v320 = vld [vmem:[#allocation2 + $0x48] sm:$0xff]
    %v321 = vld [vmem:[#allocation2 + $0x50] sm:$0xff]
    %v322 = vld [vmem:[#allocation2 + $0x58] sm:$0xff]
    %v323 = vld [vmem:[#allocation2 + $0x60] sm:$0xff]
    %v324 = vld [vmem:[#allocation2 + $0x68] sm:$0xff]
    %v325 = vld [vmem:[#allocation2 + $0x70] sm:$0xff]
    %v326 = vld [vmem:[#allocation2 + $0x78] sm:$0xff]
    %v327 = vld [vmem:[%s2] sm:$0x1]
    %v329 = vlaneseq
    %v330 = vshrl.u32 %v329, 7
    %v331 = vsub.s32 0, %v330
    %v332 = vrot.slane %v327, %v331
    %v334 = vadd.f32 %v311, %v332
    %v335 = vadd.f32 %v312, %v332
    %v336 = vadd.f32 %v313, %v332
    %v337 = vadd.f32 %v314, %v332
    %v338 = vadd.f32 %v315, %v332
    %v339 = vadd.f32 %v316, %v332
    %v340 = vadd.f32 %v317, %v332
    %v341 = vadd.f32 %v318, %v332
    %v342 = vadd.f32 %v319, %v332
    %v343 = vadd.f32 %v320, %v332
    %v344 = vadd.f32 %v321, %v332
    %v345 = vadd.f32 %v322, %v332
    %v346 = vadd.f32 %v323, %v332
    %v347 = vadd.f32 %v324, %v332
    %v348 = vadd.f32 %v325, %v332
    %v349 = vadd.f32 %v326, %v332
    %350 = vst [vmem:[%s3] sm:$0xff] %v334
    %351 = vst [vmem:[%s3 + $0x8] sm:$0xff] %v335
    %352 = vst [vmem:[%s3 + $0x10] sm:$0xff] %v336
    %353 = vst [vmem:[%s3 + $0x18] sm:$0xff] %v337
    %354 = vst [vmem:[%s3 + $0x20] sm:$0xff] %v338
    %355 = vst [vmem:[%s3 + $0x28] sm:$0xff] %v339
    %356 = vst [vmem:[%s3 + $0x30] sm:$0xff] %v340
    %357 = vst [vmem:[%s3 + $0x38] sm:$0xff] %v341
    %358 = vst [vmem:[%s3 + $0x40] sm:$0xff] %v342
    %359 = vst [vmem:[%s3 + $0x48] sm:$0xff] %v343
    %360 = vst [vmem:[%s3 + $0x50] sm:$0xff] %v344
    %361 = vst [vmem:[%s3 + $0x58] sm:$0xff] %v345
    %362 = vst [vmem:[%s3 + $0x60] sm:$0xff] %v346
    %363 = vst [vmem:[%s3 + $0x68] sm:$0xff] %v347
    %364 = vst [vmem:[%s3 + $0x70] sm:$0xff] %v348
    %365 = vst [vmem:[%s3 + $0x78] sm:$0xff] %v349
  $region21: #{_lambda_.25} parent=0 // pred_fallthru
    _
  // Predicated region
  $region22: #{_lambda_.25} parent=0 // pred_check
    _
  $region23: #{_lambda_.25} parent=0 // pred_check_branch
    %367 = sbr.rel (0) target = $region25
  $region24: #{_lambda_.25} parent=0 // pred_region
    _
  $region25: #{_lambda_.25} parent=0 // pred_fallthru
    _
  // Predicated region
  $region26: #{_lambda_.25} parent=0 // pred_check
    _
  $region27: #{_lambda_.25} parent=0 // pred_check_branch
    %369 = sbr.rel (0) target = $region29
  $region28: #{_lambda_.25} parent=0 // pred_region
    _
  $region29: #{_lambda_.25} parent=0 // pred_fallthru
    _

// kernel: _lambda_.24
$region0: #{_lambda_.24}
  #allocation0 [shape = 'u32[]', space=smem, size = 0x4, offset = 0x4, fixed_abs, tag = 'smem constant byte address 0x4 - core index']
  #allocation1 [shape = 'u32[144,128]{1,0:T(1,128)}', space=vmem, size = 0x12000, scoped, tag = 'internal scratch']
  %s0 = inlined_call_operand.vmem [shape: f32[128,128], index: 0, kind: input, shape index: {}]
  %s1 = inlined_call_operand.vmem [shape: f32[1,128], index: 1, kind: input, shape index: {}]
  %s2 = inlined_call_operand.vmem [shape: f32[1,128], index: 2, kind: input, shape index: {}]
  %s3 = inlined_call_operand.vmem [shape: bf16[128,128], index: 3, kind: output, shape index: {}]
  %s4 = sld [smem:[#allocation0]]
  $region22: #{_lambda_.24} parent=0
    _
  %s6 = ssub.s32 1, %s4
  %s7 = scalar_select 0, %s6, %s4
  // Predicated region
  $region2: #{_lambda_.24} parent=0 // pred_check
    _
  $region3: #{_lambda_.24} parent=0 // pred_check_branch
    %9 = sbr.rel (0) target = $region5
  $region4: #{_lambda_.24} parent=0 // pred_region
    _
  $region5: #{_lambda_.24} parent=0 // pred_fallthru
    _
  // Predicated region
  $region6: #{_lambda_.24} parent=0 // pred_check
    _
  $region7: #{_lambda_.24} parent=0 // pred_check_branch
    %11 = sbr.rel (0) target = $region9
  $region8: #{_lambda_.24} parent=0 // pred_region
    _
  $region9: #{_lambda_.24} parent=0 // pred_fallthru
    _
  // Predicated region
  $region10: #{_lambda_.24} parent=0 // pred_check
    _
  $region11: #{_lambda_.24} parent=0 // pred_check_branch
    %13 = sbr.rel (0) target = $region13
  $region12: #{_lambda_.24} parent=0 // pred_region
    _
  $region13: #{_lambda_.24} parent=0 // pred_fallthru
    _
  %v14 = vld [vmem:[%s0] sm:$0xff]
  %v15 = vld [vmem:[%s0 + $0x8] sm:$0xff]
  %v16 = vld [vmem:[%s0 + $0x10] sm:$0xff]
  %v17 = vld [vmem:[%s0 + $0x18] sm:$0xff]
  %v18 = vld [vmem:[%s0 + $0x20] sm:$0xff]
  %v19 = vld [vmem:[%s0 + $0x28] sm:$0xff]
  %v20 = vld [vmem:[%s0 + $0x30] sm:$0xff]
  %v21 = vld [vmem:[%s0 + $0x38] sm:$0xff]
  %v22 = vld [vmem:[%s0 + $0x40] sm:$0xff]
  %v23 = vld [vmem:[%s0 + $0x48] sm:$0xff]
  %v24 = vld [vmem:[%s0 + $0x50] sm:$0xff]
  %v25 = vld [vmem:[%s0 + $0x58] sm:$0xff]
  %v26 = vld [vmem:[%s0 + $0x60] sm:$0xff]
  %v27 = vld [vmem:[%s0 + $0x68] sm:$0xff]
  %v28 = vld [vmem:[%s0 + $0x70] sm:$0xff]
  %v29 = vld [vmem:[%s0 + $0x78] sm:$0xff]
  %v30 = vld [vmem:[%s1] sm:$0x1]
  %v32 = vlaneseq
  %v33 = vshrl.u32 %v32, 7
  %v34 = vsub.s32 0, %v33
  %v35 = vrot.slane %v30, %v34
  %v37 = vmul.f32 %v14, %v35
  %v38 = vmul.f32 %v15, %v35
  %v39 = vmul.f32 %v16, %v35
  %v40 = vmul.f32 %v17, %v35
  %v41 = vmul.f32 %v18, %v35
  %v42 = vmul.f32 %v19, %v35
  %v43 = vmul.f32 %v20, %v35
  %v44 = vmul.f32 %v21, %v35
  %v45 = vmul.f32 %v22, %v35
  %v46 = vmul.f32 %v23, %v35
  %v47 = vmul.f32 %v24, %v35
  %v48 = vmul.f32 %v25, %v35
  %v49 = vmul.f32 %v26, %v35
  %v50 = vmul.f32 %v27, %v35
  %v51 = vmul.f32 %v28, %v35
  %v52 = vmul.f32 %v29, %v35
  %v53 = vld [vmem:[%s2] sm:$0x1]
  %v55 = vlaneseq
  %v56 = vshrl.u32 %v55, 7
  %v57 = vsub.s32 0, %v56
  %v58 = vrot.slane %v53, %v57
  %v60 = vadd.f32 %v37, %v58
  %v61 = vadd.f32 %v38, %v58
  %v62 = vadd.f32 %v39, %v58
  %v63 = vadd.f32 %v40, %v58
  %v64 = vadd.f32 %v41, %v58
  %v65 = vadd.f32 %v42, %v58
  %v66 = vadd.f32 %v43, %v58
  %v67 = vadd.f32 %v44, %v58
  %v68 = vadd.f32 %v45, %v58
  %v69 = vadd.f32 %v46, %v58
  %v70 = vadd.f32 %v47, %v58
  %v71 = vadd.f32 %v48, %v58
  %v72 = vadd.f32 %v49, %v58
  %v73 = vadd.f32 %v50, %v58
  %v74 = vadd.f32 %v51, %v58
  %v75 = vadd.f32 %v52, %v58
  %v76 = vmax.f32 %v60, 0.0
  %v77 = vmax.f32 %v61, 0.0
  %v78 = vmax.f32 %v62, 0.0
  %v79 = vmax.f32 %v63, 0.0
  %v80 = vmax.f32 %v64, 0.0
  %v81 = vmax.f32 %v65, 0.0
  %v82 = vmax.f32 %v66, 0.0
  %v83 = vmax.f32 %v67, 0.0
  %v84 = vmax.f32 %v68, 0.0
  %v85 = vmax.f32 %v69, 0.0
  %v86 = vmax.f32 %v70, 0.0
  %v87 = vmax.f32 %v71, 0.0
  %v88 = vmax.f32 %v72, 0.0
  %v89 = vmax.f32 %v73, 0.0
  %v90 = vmax.f32 %v74, 0.0
  %v91 = vmax.f32 %v75, 0.0
  %v92 = vpack.c.bf16 %v77, %v76
  %v93 = vpack.c.bf16 %v79, %v78
  %v94 = vpack.c.bf16 %v81, %v80
  %v95 = vpack.c.bf16 %v83, %v82
  %v96 = vpack.c.bf16 %v85, %v84
  %v97 = vpack.c.bf16 %v87, %v86
  %v98 = vpack.c.bf16 %v89, %v88
  %v99 = vpack.c.bf16 %v91, %v90
  %v108 = vunpack.c.l.b16 %v92
  %v109 = vunpack.c.h.b16 %v92
  %v110 = vunpack.c.l.b16 %v93
  %v111 = vunpack.c.h.b16 %v93
  %v112 = vunpack.c.l.b16 %v94
  %v113 = vunpack.c.h.b16 %v94
  %v114 = vunpack.c.l.b16 %v95
  %v115 = vunpack.c.h.b16 %v95
  %v116 = vunpack.c.l.b16 %v96
  %v117 = vunpack.c.h.b16 %v96
  %v118 = vunpack.c.l.b16 %v97
  %v119 = vunpack.c.h.b16 %v97
  %v120 = vunpack.c.l.b16 %v98
  %v121 = vunpack.c.h.b16 %v98
  %v122 = vunpack.c.l.b16 %v99
  %v123 = vunpack.c.h.b16 %v99
  %v124 = vpack.c.b16 %v108, %v108
  %v125 = vpack.c.b16 %v109, %v109
  %v126 = vpack.c.b16 %v110, %v110
  %v127 = vpack.c.b16 %v111, %v111
  %v128 = vpack.c.b16 %v112, %v112
  %v129 = vpack.c.b16 %v113, %v113
  %v130 = vpack.c.b16 %v114, %v114
  %v131 = vpack.c.b16 %v115, %v115
  %v132 = vpack.c.b16 %v116, %v116
  %v133 = vpack.c.b16 %v117, %v117
  %v134 = vpack.c.b16 %v118, %v118
  %v135 = vpack.c.b16 %v119, %v119
  %v136 = vpack.c.b16 %v120, %v120
  %v137 = vpack.c.b16 %v121, %v121
  %v138 = vpack.c.b16 %v122, %v122
  %v139 = vpack.c.b16 %v123, %v123
  %156 = vst [vmem:[%s3] sm:$0xf] %v124
  %157 = vst [vmem:[%s3 + $0x4] sm:$0xf] %v125
  %158 = vst [vmem:[%s3 + $0x8] sm:$0xf] %v126
  %159 = vst [vmem:[%s3 + $0xc] sm:$0xf] %v127
  %160 = vst [vmem:[%s3 + $0x10] sm:$0xf] %v128
  %161 = vst [vmem:[%s3 + $0x14] sm:$0xf] %v129
  %162 = vst [vmem:[%s3 + $0x18] sm:$0xf] %v130
  %163 = vst [vmem:[%s3 + $0x1c] sm:$0xf] %v131
  %164 = vst [vmem:[%s3 + $0x20] sm:$0xf] %v132
  %165 = vst [vmem:[%s3 + $0x24] sm:$0xf] %v133
  %166 = vst [vmem:[%s3 + $0x28] sm:$0xf] %v134
  %167 = vst [vmem:[%s3 + $0x2c] sm:$0xf] %v135
  %168 = vst [vmem:[%s3 + $0x30] sm:$0xf] %v136
  %169 = vst [vmem:[%s3 + $0x34] sm:$0xf] %v137
  %170 = vst [vmem:[%s3 + $0x38] sm:$0xf] %v138
  %171 = vst [vmem:[%s3 + $0x3c] sm:$0xf] %v139
  // Predicated region
  $region14: #{_lambda_.24} parent=0 // pred_check
    _
  $region15: #{_lambda_.24} parent=0 // pred_check_branch
    %173 = sbr.rel (0) target = $region17
  $region16: #{_lambda_.24} parent=0 // pred_region
    _
  $region17: #{_lambda_.24} parent=0 // pred_fallthru
    _
  // Predicated region
  $region18: #{_lambda_.24} parent=0 // pred_check
    _
  $region19: #{_lambda_.24} parent=0 // pred_check_branch
    %175 = sbr.rel (0) target = $region21
  $region20: #{_lambda_.24} parent=0 // pred_region
    _
  $region21: #{_lambda_.24} parent=0 // pred_fallthru
    _

// kernel: _lambda_.28
$region0: #{_lambda_.28}
  #allocation0 [shape = 'u32[]', space=smem, size = 0x4, offset = 0x4, fixed_abs, tag = 'smem constant byte address 0x4 - core index']
  #allocation1 [shape = 'u32[144,128]{1,0:T(1,128)}', space=vmem, size = 0x12000, scoped, tag = 'internal scratch']
  #allocation2 [shape = 'f32[128,128]{1,0:T(8,128)}', space=vmem, size = 0x10000, scoped, tag = 'scratch operand']
  %s0 = inlined_call_operand.vmem [shape: bf16[128,128], index: 0, kind: input, shape index: {}]
  %s1 = inlined_call_operand.vmem [shape: bf16[128,128], index: 1, kind: input, shape index: {}]
  %s2 = inlined_call_operand.vmem [shape: f32[1,128], index: 2, kind: input, shape index: {}]
  %s3 = inlined_call_operand.vmem [shape: f32[128,128], index: 3, kind: output, shape index: {}]
  %s4 = sld [smem:[#allocation0]]
  $region30: #{_lambda_.28} parent=0
    _
  %s6 = ssub.s32 1, %s4
  %s7 = scalar_select 0, %s6, %s4
  // Predicated region
  $region2: #{_lambda_.28} parent=0 // pred_check
    _
  $region3: #{_lambda_.28} parent=0 // pred_check_branch
    %9 = sbr.rel (0) target = $region5
  $region4: #{_lambda_.28} parent=0 // pred_region
    _
  $region5: #{_lambda_.28} parent=0 // pred_fallthru
    _
  // Predicated region
  $region6: #{_lambda_.28} parent=0 // pred_check
    _
  $region7: #{_lambda_.28} parent=0 // pred_check_branch
    %11 = sbr.rel (0) target = $region9
  $region8: #{_lambda_.28} parent=0 // pred_region
    _
  $region9: #{_lambda_.28} parent=0 // pred_fallthru
    _
  // Predicated region
  $region10: #{_lambda_.28} parent=0 // pred_check
    _
  $region11: #{_lambda_.28} parent=0 // pred_check_branch
    %13 = sbr.rel (0) target = $region13
  $region12: #{_lambda_.28} parent=0 // pred_region
    _
  $region13: #{_lambda_.28} parent=0 // pred_fallthru
    _
  %p15 = scmp.eq.s32.totalorder 0, 0
  // Predicated region
  $region14: #{_lambda_.28} parent=0 // pred_check
    %p16 = pneg %p15
  $region15: #{_lambda_.28} parent=0 // pred_check_branch
    %18 = sbr.rel (%p16) target = $region17
  $region16: #{_lambda_.28} parent=0 // pred_region
    %19 = vst [vmem:[#allocation2] sm:$0xff] 0.0
    %20 = vst [vmem:[#allocation2 + $0x8] sm:$0xff] 0.0
    %21 = vst [vmem:[#allocation2 + $0x10] sm:$0xff] 0.0
    %22 = vst [vmem:[#allocation2 + $0x18] sm:$0xff] 0.0
    %23 = vst [vmem:[#allocation2 + $0x20] sm:$0xff] 0.0
    %24 = vst [vmem:[#allocation2 + $0x28] sm:$0xff] 0.0
    %25 = vst [vmem:[#allocation2 + $0x30] sm:$0xff] 0.0
    %26 = vst [vmem:[#allocation2 + $0x38] sm:$0xff] 0.0
    %27 = vst [vmem:[#allocation2 + $0x40] sm:$0xff] 0.0
    %28 = vst [vmem:[#allocation2 + $0x48] sm:$0xff] 0.0
    %29 = vst [vmem:[#allocation2 + $0x50] sm:$0xff] 0.0
    %30 = vst [vmem:[#allocation2 + $0x58] sm:$0xff] 0.0
    %31 = vst [vmem:[#allocation2 + $0x60] sm:$0xff] 0.0
    %32 = vst [vmem:[#allocation2 + $0x68] sm:$0xff] 0.0
    %33 = vst [vmem:[#allocation2 + $0x70] sm:$0xff] 0.0
    %34 = vst [vmem:[#allocation2 + $0x78] sm:$0xff] 0.0
  $region17: #{_lambda_.28} parent=0 // pred_fallthru
    _
  %v35 = vld [vmem:[#allocation2] sm:$0xff]
  %v36 = vld [vmem:[#allocation2 + $0x8] sm:$0xff]
  %v37 = vld [vmem:[#allocation2 + $0x10] sm:$0xff]
  %v38 = vld [vmem:[#allocation2 + $0x18] sm:$0xff]
  %v39 = vld [vmem:[#allocation2 + $0x20] sm:$0xff]
  %v40 = vld [vmem:[#allocation2 + $0x28] sm:$0xff]
  %v41 = vld [vmem:[#allocation2 + $0x30] sm:$0xff]
  %v42 = vld [vmem:[#allocation2 + $0x38] sm:$0xff]
  %v43 = vld [vmem:[#allocation2 + $0x40] sm:$0xff]
  %v44 = vld [vmem:[#allocation2 + $0x48] sm:$0xff]
  %v45 = vld [vmem:[#allocation2 + $0x50] sm:$0xff]
  %v46 = vld [vmem:[#allocation2 + $0x58] sm:$0xff]
  %v47 = vld [vmem:[#allocation2 + $0x60] sm:$0xff]
  %v48 = vld [vmem:[#allocation2 + $0x68] sm:$0xff]
  %v49 = vld [vmem:[#allocation2 + $0x70] sm:$0xff]
  %v50 = vld [vmem:[#allocation2 + $0x78] sm:$0xff]
  %v51 = vld [vmem:[%s0] sm:$0xf]
  %v52 = vld [vmem:[%s0 + $0x4] sm:$0xf]
  %v53 = vld [vmem:[%s0 + $0x8] sm:$0xf]
  %v54 = vld [vmem:[%s0 + $0xc] sm:$0xf]
  %v55 = vld [vmem:[%s0 + $0x10] sm:$0xf]
  %v56 = vld [vmem:[%s0 + $0x14] sm:$0xf]
  %v57 = vld [vmem:[%s0 + $0x18] sm:$0xf]
  %v58 = vld [vmem:[%s0 + $0x1c] sm:$0xf]
  %v59 = vld [vmem:[%s0 + $0x20] sm:$0xf]
  %v60 = vld [vmem:[%s0 + $0x24] sm:$0xf]
  %v61 = vld [vmem:[%s0 + $0x28] sm:$0xf]
  %v62 = vld [vmem:[%s0 + $0x2c] sm:$0xf]
  %v63 = vld [vmem:[%s0 + $0x30] sm:$0xf]
  %v64 = vld [vmem:[%s0 + $0x34] sm:$0xf]
  %v65 = vld [vmem:[%s0 + $0x38] sm:$0xf]
  %v66 = vld [vmem:[%s0 + $0x3c] sm:$0xf]
  %v67 = vld [vmem:[%s1] sm:$0xf]
  %v68 = vld [vmem:[%s1 + $0x4] sm:$0xf]
  %v69 = vld [vmem:[%s1 + $0x8] sm:$0xf]
  %v70 = vld [vmem:[%s1 + $0xc] sm:$0xf]
  %v71 = vld [vmem:[%s1 + $0x10] sm:$0xf]
  %v72 = vld [vmem:[%s1 + $0x14] sm:$0xf]
  %v73 = vld [vmem:[%s1 + $0x18] sm:$0xf]
  %v74 = vld [vmem:[%s1 + $0x1c] sm:$0xf]
  %v75 = vld [vmem:[%s1 + $0x20] sm:$0xf]
  %v76 = vld [vmem:[%s1 + $0x24] sm:$0xf]
  %v77 = vld [vmem:[%s1 + $0x28] sm:$0xf]
  %v78 = vld [vmem:[%s1 + $0x2c] sm:$0xf]
  %v79 = vld [vmem:[%s1 + $0x30] sm:$0xf]
  %v80 = vld [vmem:[%s1 + $0x34] sm:$0xf]
  %v81 = vld [vmem:[%s1 + $0x38] sm:$0xf]
  %v82 = vld [vmem:[%s1 + $0x3c] sm:$0xf]
  %v99 = vunpack.c.l.b16 %v51
  %v100 = vunpack.c.l.b16 %v52
  %v101 = vunpack.c.l.b16 %v53
  %v102 = vunpack.c.l.b16 %v54
  %v103 = vunpack.c.l.b16 %v55
  %v104 = vunpack.c.l.b16 %v56
  %v105 = vunpack.c.l.b16 %v57
  %v106 = vunpack.c.l.b16 %v58
  %v107 = vunpack.c.l.b16 %v59
  %v108 = vunpack.c.l.b16 %v60
  %v109 = vunpack.c.l.b16 %v61
  %v110 = vunpack.c.l.b16 %v62
  %v111 = vunpack.c.l.b16 %v63
  %v112 = vunpack.c.l.b16 %v64
  %v113 = vunpack.c.l.b16 %v65
  %v114 = vunpack.c.l.b16 %v66
  %v115 = vpack.c.b16 %v100, %v99
  %v116 = vpack.c.b16 %v102, %v101
  %v117 = vpack.c.b16 %v104, %v103
  %v118 = vpack.c.b16 %v106, %v105
  %v119 = vpack.c.b16 %v108, %v107
  %v120 = vpack.c.b16 %v110, %v109
  %v121 = vpack.c.b16 %v112, %v111
  %v122 = vpack.c.b16 %v114, %v113
  %v147 = vunpack.c.l.b16 %v67
  %v148 = vunpack.c.l.b16 %v68
  %v149 = vunpack.c.l.b16 %v69
  %v150 = vunpack.c.l.b16 %v70
  %v151 = vunpack.c.l.b16 %v71
  %v152 = vunpack.c.l.b16 %v72
  %v153 = vunpack.c.l.b16 %v73
  %v154 = vunpack.c.l.b16 %v74
  %v155 = vunpack.c.l.b16 %v75
  %v156 = vunpack.c.l.b16 %v76
  %v157 = vunpack.c.l.b16 %v77
  %v158 = vunpack.c.l.b16 %v78
  %v159 = vunpack.c.l.b16 %v79
  %v160 = vunpack.c.l.b16 %v80
  %v161 = vunpack.c.l.b16 %v81
  %v162 = vunpack.c.l.b16 %v82
  %v163 = vpack.c.b16 %v148, %v147
  %v164 = vpack.c.b16 %v150, %v149
  %v165 = vpack.c.b16 %v152, %v151
  %v166 = vpack.c.b16 %v154, %v153
  %v167 = vpack.c.b16 %v156, %v155
  %v168 = vpack.c.b16 %v158, %v157
  %v169 = vpack.c.b16 %v160, %v159
  %v170 = vpack.c.b16 %v162, %v161
  %179 = vmatprep.subr.bf16.mxu0 0
  %180 = vmatpush1.bf16.msra.mxu0 %v163
  %181 = vmatprep.subr.bf16.mxu0 0
  %182 = vmatpush1.bf16.msra.mxu0 %v164
  %183 = vmatprep.subr.bf16.mxu0 0
  %184 = vmatpush1.bf16.msra.mxu0 %v165
  %185 = vmatprep.subr.bf16.mxu0 0
  %186 = vmatpush1.bf16.msra.mxu0 %v166
  %187 = vmatprep.subr.bf16.mxu0 0
  %188 = vmatpush1.bf16.msra.mxu0 %v167
  %189 = vmatprep.subr.bf16.mxu0 0
  %190 = vmatpush1.bf16.msra.mxu0 %v168
  %191 = vmatprep.subr.bf16.mxu0 0
  %192 = vmatpush1.bf16.msra.mxu0 %v169
  %193 = vmatprep.subr.bf16.mxu0 0
  %194 = vmatpush1.bf16.msra.mxu0 %v170
  %195 = vmatprep.subr.bf16.mxu0 0
  %196 = vmatpush1.bf16.msra.mxu0 0
  %197 = vmatprep.subr.bf16.mxu0 0
  %198 = vmatpush1.bf16.msra.mxu0 0
  %199 = vmatprep.subr.bf16.mxu0 0
  %200 = vmatpush1.bf16.msra.mxu0 0
  %201 = vmatprep.subr.bf16.mxu0 0
  %202 = vmatpush1.bf16.msra.mxu0 0
  %203 = vmatprep.subr.bf16.mxu0 0
  %204 = vmatpush1.bf16.msra.mxu0 0
  %205 = vmatprep.subr.bf16.mxu0 0
  %206 = vmatpush1.bf16.msra.mxu0 0
  %207 = vmatprep.subr.bf16.mxu0 0
  %208 = vmatpush1.bf16.msra.mxu0 0
  %209 = vmatprep.subr.bf16.mxu0 0
  %210 = vmatpush1.bf16.msra.mxu0 0
  %211 = vmatprep.mubr.bf16.mxu0 0
  %212 = vmatmul.mubr.bf16.gmra.mrb[0].mxu0 %v115
  %v213 = vpop.f32.mrb[0].mxu0
  %v214 = vadd.f32 0.0, %v213
  %v215 = vpop.f32.mrb[0].mxu0
  %v216 = vpop.f32.mrb[0].mxu0
  %v217 = vadd.f32 0.0, %v216
  %v218 = vpop.f32.mrb[0].mxu0
  %219 = vmatprep.mubr.bf16.mxu0 0
  %220 = vmatmul.mubr.bf16.gmra.mrb[0].mxu0 %v116
  %v221 = vpop.f32.mrb[0].mxu0
  %v222 = vadd.f32 0.0, %v221
  %v223 = vpop.f32.mrb[0].mxu0
  %v224 = vpop.f32.mrb[0].mxu0
  %v225 = vadd.f32 0.0, %v224
  %v226 = vpop.f32.mrb[0].mxu0
  %227 = vmatprep.mubr.bf16.mxu0 0
  %228 = vmatmul.mubr.bf16.gmra.mrb[0].mxu0 %v117
  %v229 = vpop.f32.mrb[0].mxu0
  %v230 = vadd.f32 0.0, %v229
  %v231 = vpop.f32.mrb[0].mxu0
  %v232 = vpop.f32.mrb[0].mxu0
  %v233 = vadd.f32 0.0, %v232
  %v234 = vpop.f32.mrb[0].mxu0
  %235 = vmatprep.mubr.bf16.mxu0 0
  %236 = vmatmul.mubr.bf16.gmra.mrb[0].mxu0 %v118
  %v237 = vpop.f32.mrb[0].mxu0
  %v238 = vadd.f32 0.0, %v237
  %v239 = vpop.f32.mrb[0].mxu0
  %v240 = vpop.f32.mrb[0].mxu0
  %v241 = vadd.f32 0.0, %v240
  %v242 = vpop.f32.mrb[0].mxu0
  %243 = vmatprep.mubr.bf16.mxu0 0
  %244 = vmatmul.mubr.bf16.gmra.mrb[0].mxu0 %v119
  %v245 = vpop.f32.mrb[0].mxu0
  %v246 = vadd.f32 0.0, %v245
  %v247 = vpop.f32.mrb[0].mxu0
  %v248 = vpop.f32.mrb[0].mxu0
  %v249 = vadd.f32 0.0, %v248
  %v250 = vpop.f32.mrb[0].mxu0
  %251 = vmatprep.mubr.bf16.mxu0 0
  %252 = vmatmul.mubr.bf16.gmra.mrb[0].mxu0 %v120
  %v253 = vpop.f32.mrb[0].mxu0
  %v254 = vadd.f32 0.0, %v253
  %v255 = vpop.f32.mrb[0].mxu0
  %v256 = vpop.f32.mrb[0].mxu0
  %v257 = vadd.f32 0.0, %v256
  %v258 = vpop.f32.mrb[0].mxu0
  %259 = vmatprep.mubr.bf16.mxu0 0
  %260 = vmatmul.mubr.bf16.gmra.mrb[0].mxu0 %v121
  %v261 = vpop.f32.mrb[0].mxu0
  %v262 = vadd.f32 0.0, %v261
  %v263 = vpop.f32.mrb[0].mxu0
  %v264 = vpop.f32.mrb[0].mxu0
  %v265 = vadd.f32 0.0, %v264
  %v266 = vpop.f32.mrb[0].mxu0
  %267 = vmatprep.mubr.bf16.mxu0 0
  %268 = vmatmul.mubr.bf16.gmra.mrb[0].mxu0 %v122
  %v269 = vpop.f32.mrb[0].mxu0
  %v270 = vadd.f32 0.0, %v269
  %v271 = vpop.f32.mrb[0].mxu0
  %v272 = vpop.f32.mrb[0].mxu0
  %v273 = vadd.f32 0.0, %v272
  %v274 = vpop.f32.mrb[0].mxu0
  %275 = vdwg.mxu0
  %v276 = vadd.f32 %v35, %v214
  %v277 = vadd.f32 %v36, %v217
  %v278 = vadd.f32 %v37, %v222
  %v279 = vadd.f32 %v38, %v225
  %v280 = vadd.f32 %v39, %v230
  %v281 = vadd.f32 %v40, %v233
  %v282 = vadd.f32 %v41, %v238
  %v283 = vadd.f32 %v42, %v241
  %v284 = vadd.f32 %v43, %v246
  %v285 = vadd.f32 %v44, %v249
  %v286 = vadd.f32 %v45, %v254
  %v287 = vadd.f32 %v46, %v257
  %v288 = vadd.f32 %v47, %v262
  %v289 = vadd.f32 %v48, %v265
  %v290 = vadd.f32 %v49, %v270
  %v291 = vadd.f32 %v50, %v273
  %292 = vst [vmem:[#allocation2] sm:$0xff] %v276
  %293 = vst [vmem:[#allocation2 + $0x8] sm:$0xff] %v277
  %294 = vst [vmem:[#allocation2 + $0x10] sm:$0xff] %v278
  %295 = vst [vmem:[#allocation2 + $0x18] sm:$0xff] %v279
  %296 = vst [vmem:[#allocation2 + $0x20] sm:$0xff] %v280
  %297 = vst [vmem:[#allocation2 + $0x28] sm:$0xff] %v281
  %298 = vst [vmem:[#allocation2 + $0x30] sm:$0xff] %v282
  %299 = vst [vmem:[#allocation2 + $0x38] sm:$0xff] %v283
  %300 = vst [vmem:[#allocation2 + $0x40] sm:$0xff] %v284
  %301 = vst [vmem:[#allocation2 + $0x48] sm:$0xff] %v285
  %302 = vst [vmem:[#allocation2 + $0x50] sm:$0xff] %v286
  %303 = vst [vmem:[#allocation2 + $0x58] sm:$0xff] %v287
  %304 = vst [vmem:[#allocation2 + $0x60] sm:$0xff] %v288
  %305 = vst [vmem:[#allocation2 + $0x68] sm:$0xff] %v289
  %306 = vst [vmem:[#allocation2 + $0x70] sm:$0xff] %v290
  %307 = vst [vmem:[#allocation2 + $0x78] sm:$0xff] %v291
  // Predicated region
  $region18: #{_lambda_.28} parent=0 // pred_check
    %p308 = pneg %p15
  $region19: #{_lambda_.28} parent=0 // pred_check_branch
    %310 = sbr.rel (%p308) target = $region21
  $region20: #{_lambda_.28} parent=0 // pred_region
    %v311 = vld [vmem:[#allocation2] sm:$0xff]
    %v312 = vld [vmem:[#allocation2 + $0x8] sm:$0xff]
    %v313 = vld [vmem:[#allocation2 + $0x10] sm:$0xff]
    %v314 = vld [vmem:[#allocation2 + $0x18] sm:$0xff]
    %v315 = vld [vmem:[#allocation2 + $0x20] sm:$0xff]
    %v316 = vld [vmem:[#allocation2 + $0x28] sm:$0xff]
    %v317 = vld [vmem:[#allocation2 + $0x30] sm:$0xff]
    %v318 = vld [vmem:[#allocation2 + $0x38] sm:$0xff]
    %v319 = vld [vmem:[#allocation2 + $0x40] sm:$0xff]
    %v320 = vld [vmem:[#allocation2 + $0x48] sm:$0xff]
    %v321 = vld [vmem:[#allocation2 + $0x50] sm:$0xff]
    %v322 = vld [vmem:[#allocation2 + $0x58] sm:$0xff]
    %v323 = vld [vmem:[#allocation2 + $0x60] sm:$0xff]
    %v324 = vld [vmem:[#allocation2 + $0x68] sm:$0xff]
    %v325 = vld [vmem:[#allocation2 + $0x70] sm:$0xff]
    %v326 = vld [vmem:[#allocation2 + $0x78] sm:$0xff]
    %v327 = vld [vmem:[%s2] sm:$0x1]
    %v329 = vlaneseq
    %v330 = vshrl.u32 %v329, 7
    %v331 = vsub.s32 0, %v330
    %v332 = vrot.slane %v327, %v331
    %v334 = vadd.f32 %v311, %v332
    %v335 = vadd.f32 %v312, %v332
    %v336 = vadd.f32 %v313, %v332
    %v337 = vadd.f32 %v314, %v332
    %v338 = vadd.f32 %v315, %v332
    %v339 = vadd.f32 %v316, %v332
    %v340 = vadd.f32 %v317, %v332
    %v341 = vadd.f32 %v318, %v332
    %v342 = vadd.f32 %v319, %v332
    %v343 = vadd.f32 %v320, %v332
    %v344 = vadd.f32 %v321, %v332
    %v345 = vadd.f32 %v322, %v332
    %v346 = vadd.f32 %v323, %v332
    %v347 = vadd.f32 %v324, %v332
    %v348 = vadd.f32 %v325, %v332
    %v349 = vadd.f32 %v326, %v332
    %v350 = vtanh.pop %v334
    %v351 = vtanh.pop %v335
    %v352 = vtanh.pop %v336
    %v353 = vtanh.pop %v337
    %v354 = vtanh.pop %v338
    %v355 = vtanh.pop %v339
    %v356 = vtanh.pop %v340
    %v357 = vtanh.pop %v341
    %v358 = vtanh.pop %v342
    %v359 = vtanh.pop %v343
    %v360 = vtanh.pop %v344
    %v361 = vtanh.pop %v345
    %v362 = vtanh.pop %v346
    %v363 = vtanh.pop %v347
    %v364 = vtanh.pop %v348
    %v365 = vtanh.pop %v349
    %366 = vst [vmem:[%s3] sm:$0xff] %v350
    %367 = vst [vmem:[%s3 + $0x8] sm:$0xff] %v351
    %368 = vst [vmem:[%s3 + $0x10] sm:$0xff] %v352
    %369 = vst [vmem:[%s3 + $0x18] sm:$0xff] %v353
    %370 = vst [vmem:[%s3 + $0x20] sm:$0xff] %v354
    %371 = vst [vmem:[%s3 + $0x28] sm:$0xff] %v355
    %372 = vst [vmem:[%s3 + $0x30] sm:$0xff] %v356
    %373 = vst [vmem:[%s3 + $0x38] sm:$0xff] %v357
    %374 = vst [vmem:[%s3 + $0x40] sm:$0xff] %v358
    %375 = vst [vmem:[%s3 + $0x48] sm:$0xff] %v359
    %376 = vst [vmem:[%s3 + $0x50] sm:$0xff] %v360
    %377 = vst [vmem:[%s3 + $0x58] sm:$0xff] %v361
    %378 = vst [vmem:[%s3 + $0x60] sm:$0xff] %v362
    %379 = vst [vmem:[%s3 + $0x68] sm:$0xff] %v363
    %380 = vst [vmem:[%s3 + $0x70] sm:$0xff] %v364
    %381 = vst [vmem:[%s3 + $0x78] sm:$0xff] %v365
  $region21: #{_lambda_.28} parent=0 // pred_fallthru
    _
  // Predicated region
  $region22: #{_lambda_.28} parent=0 // pred_check
    _
  $region23: #{_lambda_.28} parent=0 // pred_check_branch
    %383 = sbr.rel (0) target = $region25
  $region24: #{_lambda_.28} parent=0 // pred_region
    _
  $region25: #{_lambda_.28} parent=0 // pred_fallthru
    _
  // Predicated region
  $region26: #{_lambda_.28} parent=0 // pred_check
    _
  $region27: #{_lambda_.28} parent=0 // pred_check_branch
    %385 = sbr.rel (0) target = $region29
  $region28: #{_lambda_.28} parent=0 // pred_region
    _
  $region29: #{_lambda_.28} parent=0 // pred_fallthru
    _

</llo_original>
